<compile_context>
chip_gen: v7x
topology: tpu7x:2x2x1
jax: 0.10.0
libtpu: 0.0.40
codegen_flags: <defaults>
</compile_context>

<pallas_src>
import functools

import jax
import jax.numpy as jnp
from jax.experimental import pallas as pl
from jax.experimental.pallas import tpu as pltpu


def _vmem_limit_bytes():
    """Generation-aware scoped-VMEM limit: ~75% of physical VMEM.

    v5e/v6e (128 MiB physical) -> 96 MiB, v7x (64 MiB physical) -> 48 MiB.
    Falls back conservatively (48 MiB) if the query is unavailable.
    """
    try:
        cap = pltpu.get_tpu_info().vmem_capacity_bytes
    except Exception:
        cap = 64 * 1024 * 1024
    return max(32 * 1024 * 1024, int(cap) * 3 // 4)


_VMEM_LIMIT = _vmem_limit_bytes()


def _divisor_tile(n, cap):
    """Largest tile <= cap dividing n (prefer multiples of 128, then of 8).

    Falls back to the full dim if no aligned divisor exists (e.g. prime S);
    used for the attention q/kv tiles where a ragged kv tail would pollute the
    softmax.
    """
    if n <= cap:
        return n
    for align in (128, 8):
        t = (cap // align) * align
        while t >= align:
            if n % t == 0:
                return t
            t -= align
    return n


def _row_tile(n, cap=512):
    """Row tile for the linear kernels.

    Full array when small; otherwise a fixed 512-row tile (multiple of 8) with
    a pl.cdiv grid -- Pallas pads/masks the ragged last block, so no awkward-N
    fallback to a single huge block is needed.
    """
    return n if n <= cap else cap


# --------------------------- QKV projection kernel ----------------------------
def _qkv_proj_kernel(x_ref, w_ref, q_ref, k_ref, v_ref, *, scale):
    # (tm, D) @ (D, 3*inner) with f32 accumulation on the MXU.
    acc = jnp.dot(x_ref[...], w_ref[...], preferred_element_type=jnp.float32)
    inner = q_ref.shape[-1]
    # Fold the softmax scale (dim**-0.5) into q here: one fused multiply per
    # element instead of scaling (tq, S) score matrices in the attention kernel.
    q_ref[...] = (acc[:, :inner] * scale).astype(q_ref.dtype)
    k_ref[...] = acc[:, inner:2 * inner].astype(k_ref.dtype)
    v_ref[...] = acc[:, 2 * inner:].astype(v_ref.dtype)


def _qkv_proj(x2, w_qkv, inner, scale):
    """x2: (N, D) @ w_qkv: (D, 3*inner) -> q, k, v each (N, inner), lane-dense.

    Row-tiled and pipelined; the weight block index is constant so it is only
    DMA'd once and stays resident across grid steps.
    """
    N, D = x2.shape
    tm = _row_tile(N)
    grid = (pl.cdiv(N, tm),)
    out = jax.ShapeDtypeStruct((N, inner), x2.dtype)
    kernel = functools.partial(_qkv_proj_kernel, scale=scale)
    return pl.pallas_call(
        kernel,
        out_shape=(out, out, out),
        grid_spec=pl.GridSpec(
            grid=grid,
            in_specs=[
                pl.BlockSpec((tm, D), lambda i: (i, 0)),          # row tile (pipelined)
                pl.BlockSpec((D, 3 * inner), lambda i: (0, 0)),   # weight resident
            ],
            out_specs=(
                pl.BlockSpec((tm, inner), lambda i: (i, 0)),
                pl.BlockSpec((tm, inner), lambda i: (i, 0)),
                pl.BlockSpec((tm, inner), lambda i: (i, 0)),
            ),
        ),
        compiler_params=pltpu.CompilerParams(
            dimension_semantics=("parallel",),
            vmem_limit_bytes=_VMEM_LIMIT,
        ),
    )(x2, w_qkv)


# ---------------------------- Output projection -------------------------------
def _out_proj_kernel(x_ref, w_ref, b_ref, o_ref):
    acc = jnp.dot(x_ref[...], w_ref[...], preferred_element_type=jnp.float32)
    o_ref[...] = (acc + b_ref[...].astype(jnp.float32)).astype(o_ref.dtype)


def _out_proj(x2, w, b):
    """x2: (N, H_in) @ w: (H_in, H_out) + b -> (N, H_out), row-tiled."""
    N, H_in = x2.shape
    H_out = w.shape[1]
    tm = _row_tile(N)
    grid = (pl.cdiv(N, tm),)
    return pl.pallas_call(
        _out_proj_kernel,
        out_shape=jax.ShapeDtypeStruct((N, H_out), x2.dtype),
        grid_spec=pl.GridSpec(
            grid=grid,
            in_specs=[
                pl.BlockSpec((tm, H_in), lambda i: (i, 0)),
                pl.BlockSpec((H_in, H_out), lambda i: (0, 0)),    # weight resident
                pl.BlockSpec((1, H_out), lambda i: (0, 0)),       # bias resident
            ],
            out_specs=pl.BlockSpec((tm, H_out), lambda i: (i, 0)),
        ),
        compiler_params=pltpu.CompilerParams(
            dimension_semantics=("parallel",),
            vmem_limit_bytes=_VMEM_LIMIT,
        ),
    )(x2, w, b.reshape(1, H_out))


# ---------------------------- Attention kernel ---------------------------------
def _attn_kernel(q_ref, k_ref, v_ref, o_ref, m_ref, l_ref, acc_ref, *, heads, dh):
    kv = pl.program_id(2)

    @pl.when(kv == 0)
    def _():
        m_ref[...] = jnp.full_like(m_ref, -jnp.inf)
        l_ref[...] = jnp.zeros_like(l_ref)
        acc_ref[...] = jnp.zeros_like(acc_ref)

    q = q_ref[0]   # (tq,  heads*dh)  -- softmax scale already folded into q
    k = k_ref[0]   # (tkv, heads*dh)
    v = v_ref[0]   # (tkv, heads*dh)

    # Online softmax per head; the head loop unrolls (heads is small) into
    # plain 2-D MXU matmuls + static lane slices. Softmax math stays in f32.
    for h in range(heads):
        sl = slice(h * dh, (h + 1) * dh)
        q_h, k_h, v_h = q[:, sl], k[:, sl], v[:, sl]
        s = jax.lax.dot_general(                                  # (tq, tkv) f32
            q_h, k_h, (((1,), (1,)), ((), ())),
            preferred_element_type=jnp.float32)
        m_prev = m_ref[h]                                         # (tq, 1)
        m_new = jnp.maximum(m_prev, jnp.max(s, axis=-1, keepdims=True))
        alpha = jnp.exp(m_prev - m_new)                           # EUP
        p = jnp.exp(s - m_new)                                    # EUP, unnormalized
        l_ref[h] = alpha * l_ref[h] + jnp.sum(p, axis=-1, keepdims=True)
        acc_ref[h] = alpha * acc_ref[h] + jnp.dot(
            p.astype(v_h.dtype), v_h, preferred_element_type=jnp.float32)
        m_ref[h] = m_new

    @pl.when(kv == pl.num_programs(2) - 1)
    def _():
        outs = []
        for h in range(heads):
            l_h = l_ref[h]
            inv = pl.reciprocal(l_h, approx=True)                 # EUP slot
            inv = inv * (2.0 - l_h * inv)                         # 1 Newton step, (tq,1)
            outs.append(acc_ref[h] * inv)                         # deferred normalize
        # Lane-dense store, already in 'b n (h d)' layout -> no transpose after.
        o_ref[0] = jnp.concatenate(outs, axis=-1).astype(o_ref.dtype)


def _attention(q, k, v, heads, dh, *, tq_cap=256, tkv_cap=512):
    """q,k,v: (B, S, heads*dh) -> softmax(q k^T) v, output in (B, S, heads*dh)."""
    B, S, inner = q.shape
    tq = _divisor_tile(S, tq_cap)     # >=256 when S allows (v6e/v7x MXU M dim)
    tkv = _divisor_tile(S, tkv_cap)
    grid = (B, S // tq, S // tkv)     # kv axis last + "arbitrary" (accumulator)
    kernel = functools.partial(_attn_kernel, heads=heads, dh=dh)
    return pl.pallas_call(
        kernel,
        out_shape=jax.ShapeDtypeStruct((B, S, inner), q.dtype),
        grid_spec=pltpu.PrefetchScalarGridSpec(
            num_scalar_prefetch=0,
            grid=grid,
            in_specs=[
                pl.BlockSpec((1, tq, inner), lambda b, qi, kv: (b, qi, 0)),
                pl.BlockSpec((1, tkv, inner), lambda b, qi, kv: (b, kv, 0)),
                pl.BlockSpec((1, tkv, inner), lambda b, qi, kv: (b, kv, 0)),
            ],
            out_specs=pl.BlockSpec((1, tq, inner), lambda b, qi, kv: (b, qi, 0)),
            scratch_shapes=[
                pltpu.VMEM((heads, tq, 1), jnp.float32),    # running max  m
                pltpu.VMEM((heads, tq, 1), jnp.float32),    # running sum  l
                pltpu.VMEM((heads, tq, dh), jnp.float32),   # running numerator
            ],
        ),
        compiler_params=pltpu.CompilerParams(
            dimension_semantics=("parallel", "parallel", "arbitrary"),
            vmem_limit_bytes=_VMEM_LIMIT,
        ),
    )(q, k, v)


# ------------------------------ Full forward -----------------------------------
@functools.partial(jax.jit, static_argnums=(4,))
def attention_forward(x, w_qkv, w_out, b_out, heads):
    """Pallas implementation of Attention.forward (mask=None, dropout p=0)."""
    B, S, D = x.shape
    inner = w_qkv.shape[1] // 3
    dh = inner // heads
    scale = D ** (-0.5)  # NOTE: module scales by dim**-0.5 (not dim_head**-0.5)

    # TODO(synk): boolean `mask` path (F.pad + outer-product masked_fill) not implemented.

    x2 = x.reshape(B * S, D)                       # free: leading-dim merge
    q, k, v = _qkv_proj(x2, w_qkv, inner, scale)   # (B*S, inner) each, 'b n (h d)'
    q = q.reshape(B, S, inner)                     # free: leading-dim split
    k = k.reshape(B, S, inner)
    v = v.reshape(B, S, inner)

    attn = _attention(q, k, v, heads, dh)          # (B, S, inner), lane-dense

    out2 = _out_proj(attn.reshape(B * S, inner), w_out, b_out)   # (B*S, D)
    # Dropout(p=0.0) is identity in this forward.
    return out2.reshape(B, S, D)


# -------------------------------- Reference -------------------------------------
def attention_ref(x, w_qkv, w_out, b_out, heads):
    B, S, D = x.shape
    inner = w_qkv.shape[1] // 3
    dh = inner // heads
    scale = D ** (-0.5)
    xf = x.astype(jnp.float32)
    qkv = xf @ w_qkv.astype(jnp.float32)
    q, k, v = jnp.split(qkv, 3, axis=-1)

    def heads_first(t):
        return t.reshape(B, S, heads, dh).transpose(0, 2, 1, 3)

    q, k, v = map(heads_first, (q, k, v))
    dots = jnp.einsum("bhid,bhjd->bhij", q, k) * scale
    attn = jax.nn.softmax(dots, axis=-1)
    out = jnp.einsum("bhij,bhjd->bhid", attn, v)
    out = out.transpose(0, 2, 1, 3).reshape(B, S, inner)
    return out @ w_out.astype(jnp.float32) + b_out.astype(jnp.float32)


if __name__ == "__main__":
    B, S, D = 2, 8, 32
    heads, dim_head = 4, 16
    inner = heads * dim_head

    key = jax.random.PRNGKey(0)
    kx, kq, ko, kb = jax.random.split(key, 4)
    x = jax.random.normal(kx, (B, S, D), dtype=jnp.float32)
    w_qkv = jax.random.normal(kq, (D, 3 * inner), dtype=jnp.float32) * (D ** -0.5)
    w_out = jax.random.normal(ko, (inner, D), dtype=jnp.float32) * (inner ** -0.5)
    b_out = jax.random.normal(kb, (D,), dtype=jnp.float32) * 0.01

    ref = attention_ref(x, w_qkv, w_out, b_out, heads)

    # Tight f32 correctness check.
    out = attention_forward(x, w_qkv, w_out, b_out, heads)
    jax.block_until_ready(out)
    assert out.shape == (B, S, D)
    err = float(jnp.max(jnp.abs(out.astype(jnp.float32) - ref)))
    assert jnp.allclose(out.astype(jnp.float32), ref, atol=2e-3, rtol=2e-3), err

    # bf16 smoke test (full-rate MXU path): loose tolerance vs the f32 reference.
    out_bf16 = attention_forward(
        x.astype(jnp.bfloat16), w_qkv.astype(jnp.bfloat16),
        w_out.astype(jnp.bfloat16), b_out.astype(jnp.bfloat16), heads)
    jax.block_until_ready(out_bf16)
    err_bf16 = float(jnp.max(jnp.abs(out_bf16.astype(jnp.float32) - ref)))
    assert jnp.allclose(out_bf16.astype(jnp.float32), ref, atol=2e-1, rtol=2e-1), err_bf16

    print("KERNEL_OK")
</pallas_src>

<mosaic_0001>
module attributes {stable_mosaic.version = 11 : i64} {
  func.func @_qkv_proj_kernel(%arg0: i32, %arg1: memref<16x32xf32, #tpu.memory_space<vmem>>, %arg2: memref<32x192xf32, #tpu.memory_space<vmem>>, %arg3: memref<16x64xf32, #tpu.memory_space<vmem>>, %arg4: memref<16x64xf32, #tpu.memory_space<vmem>>, %arg5: memref<16x64xf32, #tpu.memory_space<vmem>>) attributes {dimension_semantics = [#tpu.dimension_semantics<parallel>], iteration_bounds = array<i64: 1>, scalar_prefetch = 0 : i64, scratch_operands = 0 : i64, tpu.core_type = #tpu.core_type<tc>, window_params = [{transform_indices = @transform_0, window_bounds = array<i64: 16, 32>}, {pipeline_mode = #tpu.pipeline_mode<synchronous>, transform_indices = @transform_1, window_bounds = array<i64: 32, 192>}, {transform_indices = @transform_2, window_bounds = array<i64: 16, 64>}, {transform_indices = @transform_3, window_bounds = array<i64: 16, 64>}, {transform_indices = @transform_4, window_bounds = array<i64: 16, 64>}]} {
    %c0 = arith.constant 0 : index
    %c0_0 = arith.constant 0 : index
    %0 = vector.load %arg1[%c0, %c0_0] : memref<16x32xf32, #tpu.memory_space<vmem>>, vector<16x32xf32>
    %c0_1 = arith.constant 0 : index
    %c0_2 = arith.constant 0 : index
    %1 = vector.load %arg2[%c0_1, %c0_2] : memref<32x192xf32, #tpu.memory_space<vmem>>, vector<32x192xf32>
    %cst = arith.constant dense<0.000000e+00> : vector<16x192xf32>
    %2 = tpu.matmul %0, %1, %cst {dimension_numbers = #tpu.dot_dimension_numbers<[1], [0], [0], [1], [0, 0, 1, 1], [], []>} : vector<16x32xf32>, vector<32x192xf32>, vector<16x192xf32> -> vector<16x192xf32>
    %3 = vector.extract_strided_slice %2 {offsets = [0, 0], sizes = [16, 64], strides = [1, 1]} : vector<16x192xf32> to vector<16x64xf32>
    %cst_3 = arith.constant 0.176776692 : f32
    %4 = vector.broadcast %cst_3 : f32 to vector<16x64xf32>
    %5 = arith.mulf %3, %4 : vector<16x64xf32>
    %c0_4 = arith.constant 0 : index
    %c0_5 = arith.constant 0 : index
    %6 = vector.load %arg3[%c0_4, %c0_5] : memref<16x64xf32, #tpu.memory_space<vmem>>, vector<16x64xf32>
    tpu.vector_store %arg3[%c0_4, %c0_5], %5 {strides = array<i32>} : memref<16x64xf32, #tpu.memory_space<vmem>>, vector<16x64xf32>,
    %7 = vector.extract_strided_slice %2 {offsets = [0, 64], sizes = [16, 64], strides = [1, 1]} : vector<16x192xf32> to vector<16x64xf32>
    %c0_6 = arith.constant 0 : index
    %c0_7 = arith.constant 0 : index
    %8 = vector.load %arg4[%c0_6, %c0_7] : memref<16x64xf32, #tpu.memory_space<vmem>>, vector<16x64xf32>
    tpu.vector_store %arg4[%c0_6, %c0_7], %7 {strides = array<i32>} : memref<16x64xf32, #tpu.memory_space<vmem>>, vector<16x64xf32>,
    %9 = vector.extract_strided_slice %2 {offsets = [0, 128], sizes = [16, 64], strides = [1, 1]} : vector<16x192xf32> to vector<16x64xf32>
    %c0_8 = arith.constant 0 : index
    %c0_9 = arith.constant 0 : index
    %10 = vector.load %arg5[%c0_8, %c0_9] : memref<16x64xf32, #tpu.memory_space<vmem>>, vector<16x64xf32>
    tpu.vector_store %arg5[%c0_8, %c0_9], %9 {strides = array<i32>} : memref<16x64xf32, #tpu.memory_space<vmem>>, vector<16x64xf32>,
    return
  }
  func.func @transform_0(%arg0: i32) -> (i32, i32) {
    %c0_i32 = arith.constant 0 : i32
    %c0_i32_0 = arith.constant 0 : i32
    return %arg0, %c0_i32 : i32, i32
  }
  func.func @transform_1(%arg0: i32) -> (i32, i32) {
    %c0_i32 = arith.constant 0 : i32
    %c0_i32_0 = arith.constant 0 : i32
    %c0_i32_1 = arith.constant 0 : i32
    return %c0_i32, %c0_i32_0 : i32, i32
  }
  func.func @transform_2(%arg0: i32) -> (i32, i32) {
    %c0_i32 = arith.constant 0 : i32
    %c0_i32_0 = arith.constant 0 : i32
    return %arg0, %c0_i32 : i32, i32
  }
  func.func @transform_3(%arg0: i32) -> (i32, i32) {
    %c0_i32 = arith.constant 0 : i32
    %c0_i32_0 = arith.constant 0 : i32
    return %arg0, %c0_i32 : i32, i32
  }
  func.func @transform_4(%arg0: i32) -> (i32, i32) {
    %c0_i32 = arith.constant 0 : i32
    %c0_i32_0 = arith.constant 0 : i32
    return %arg0, %c0_i32 : i32, i32
  }
}

module attributes {stable_mosaic.version = 11 : i64} {
  func.func @_out_proj_kernel(%arg0: i32, %arg1: memref<16x64xf32, #tpu.memory_space<vmem>>, %arg2: memref<64x32xf32, #tpu.memory_space<vmem>>, %arg3: memref<1x32xf32, #tpu.memory_space<vmem>>, %arg4: memref<16x32xf32, #tpu.memory_space<vmem>>) attributes {dimension_semantics = [#tpu.dimension_semantics<parallel>], iteration_bounds = array<i64: 1>, scalar_prefetch = 0 : i64, scratch_operands = 0 : i64, tpu.core_type = #tpu.core_type<tc>, window_params = [{transform_indices = @transform_0, window_bounds = array<i64: 16, 64>}, {pipeline_mode = #tpu.pipeline_mode<synchronous>, transform_indices = @transform_1, window_bounds = array<i64: 64, 32>}, {pipeline_mode = #tpu.pipeline_mode<synchronous>, transform_indices = @transform_2, window_bounds = array<i64: 1, 32>}, {transform_indices = @transform_3, window_bounds = array<i64: 16, 32>}]} {
    %c0 = arith.constant 0 : index
    %c0_0 = arith.constant 0 : index
    %0 = vector.load %arg1[%c0, %c0_0] : memref<16x64xf32, #tpu.memory_space<vmem>>, vector<16x64xf32>
    %c0_1 = arith.constant 0 : index
    %c0_2 = arith.constant 0 : index
    %1 = vector.load %arg2[%c0_1, %c0_2] : memref<64x32xf32, #tpu.memory_space<vmem>>, vector<64x32xf32>
    %cst = arith.constant dense<0.000000e+00> : vector<16x32xf32>
    %2 = tpu.matmul %0, %1, %cst {dimension_numbers = #tpu.dot_dimension_numbers<[1], [0], [0], [1], [0, 0, 1, 1], [], []>} : vector<16x64xf32>, vector<64x32xf32>, vector<16x32xf32> -> vector<16x32xf32>
    %c0_3 = arith.constant 0 : index
    %c0_4 = arith.constant 0 : index
    %3 = vector.load %arg3[%c0_3, %c0_4] : memref<1x32xf32, #tpu.memory_space<vmem>>, vector<1x32xf32>
    %4 = vector.broadcast %3 : vector<1x32xf32> to vector<16x32xf32>
    %5 = arith.addf %2, %4 : vector<16x32xf32>
    %c0_5 = arith.constant 0 : index
    %c0_6 = arith.constant 0 : index
    %6 = vector.load %arg4[%c0_5, %c0_6] : memref<16x32xf32, #tpu.memory_space<vmem>>, vector<16x32xf32>
    tpu.vector_store %arg4[%c0_5, %c0_6], %5 {strides = array<i32>} : memref<16x32xf32, #tpu.memory_space<vmem>>, vector<16x32xf32>,
    return
  }
  func.func @transform_0(%arg0: i32) -> (i32, i32) {
    %c0_i32 = arith.constant 0 : i32
    %c0_i32_0 = arith.constant 0 : i32
    return %arg0, %c0_i32 : i32, i32
  }
  func.func @transform_1(%arg0: i32) -> (i32, i32) {
    %c0_i32 = arith.constant 0 : i32
    %c0_i32_0 = arith.constant 0 : i32
    %c0_i32_1 = arith.constant 0 : i32
    return %c0_i32, %c0_i32_0 : i32, i32
  }
  func.func @transform_2(%arg0: i32) -> (i32, i32) {
    %c0_i32 = arith.constant 0 : i32
    %c0_i32_0 = arith.constant 0 : i32
    %c0_i32_1 = arith.constant 0 : i32
    return %c0_i32, %c0_i32_0 : i32, i32
  }
  func.func @transform_3(%arg0: i32) -> (i32, i32) {
    %c0_i32 = arith.constant 0 : i32
    %c0_i32_0 = arith.constant 0 : i32
    return %arg0, %c0_i32 : i32, i32
  }
}

module attributes {stable_mosaic.version = 11 : i64} {
  func.func @_attn_kernel(%arg0: i32, %arg1: i32, %arg2: i32, %arg3: memref<1x8x64xf32, #tpu.memory_space<vmem>>, %arg4: memref<1x8x64xf32, #tpu.memory_space<vmem>>, %arg5: memref<1x8x64xf32, #tpu.memory_space<vmem>>, %arg6: memref<1x8x64xf32, #tpu.memory_space<vmem>>, %arg7: memref<4x8x1xf32, #tpu.memory_space<vmem>>, %arg8: memref<4x8x1xf32, #tpu.memory_space<vmem>>, %arg9: memref<4x8x16xf32, #tpu.memory_space<vmem>>) attributes {dimension_semantics = [#tpu.dimension_semantics<parallel>, #tpu.dimension_semantics<parallel>, #tpu.dimension_semantics<arbitrary>], iteration_bounds = array<i64: 2, 1, 1>, scalar_prefetch = 0 : i64, scratch_operands = 3 : i64, tpu.core_type = #tpu.core_type<tc>, window_params = [{transform_indices = @transform_0, window_bounds = array<i64: 1, 8, 64>}, {transform_indices = @transform_1, window_bounds = array<i64: 1, 8, 64>}, {transform_indices = @transform_2, window_bounds = array<i64: 1, 8, 64>}, {transform_indices = @transform_3, window_bounds = array<i64: 1, 8, 64>}]} {
    %c0_i32 = arith.constant 0 : i32
    %0 = arith.cmpi eq, %arg2, %c0_i32 : i32
    %1 = arith.extui %0 : i1 to i32
    %c0_i32_0 = arith.constant 0 : i32
    %2 = arith.cmpi ne, %1, %c0_i32_0 : i32
    scf.if %2 {
      %cst_95 = arith.constant 0xFF800000 : f32
      %152 = vector.broadcast %cst_95 : f32 to vector<4x8x1xf32>
      %c0_96 = arith.constant 0 : index
      %c0_97 = arith.constant 0 : index
      %c0_98 = arith.constant 0 : index
      %153 = vector.load %arg7[%c0_96, %c0_97, %c0_98] : memref<4x8x1xf32, #tpu.memory_space<vmem>>, vector<4x8x1xf32>
      tpu.vector_store %arg7[%c0_96, %c0_97, %c0_98], %152 {strides = array<i32>} : memref<4x8x1xf32, #tpu.memory_space<vmem>>, vector<4x8x1xf32>,
      %cst_99 = arith.constant 0.000000e+00 : f32
      %154 = vector.broadcast %cst_99 : f32 to vector<4x8x1xf32>
      %c0_100 = arith.constant 0 : index
      %c0_101 = arith.constant 0 : index
      %c0_102 = arith.constant 0 : index
      %155 = vector.load %arg8[%c0_100, %c0_101, %c0_102] : memref<4x8x1xf32, #tpu.memory_space<vmem>>, vector<4x8x1xf32>
      tpu.vector_store %arg8[%c0_100, %c0_101, %c0_102], %154 {strides = array<i32>} : memref<4x8x1xf32, #tpu.memory_space<vmem>>, vector<4x8x1xf32>,
      %cst_103 = arith.constant 0.000000e+00 : f32
      %156 = vector.broadcast %cst_103 : f32 to vector<4x8x16xf32>
      %c0_104 = arith.constant 0 : index
      %c0_105 = arith.constant 0 : index
      %c0_106 = arith.constant 0 : index
      %157 = vector.load %arg9[%c0_104, %c0_105, %c0_106] : memref<4x8x16xf32, #tpu.memory_space<vmem>>, vector<4x8x16xf32>
      tpu.vector_store %arg9[%c0_104, %c0_105, %c0_106], %156 {strides = array<i32>} : memref<4x8x16xf32, #tpu.memory_space<vmem>>, vector<4x8x16xf32>,
    } else {
    }
    %c0 = arith.constant 0 : index
    %c0_1 = arith.constant 0 : index
    %c0_2 = arith.constant 0 : index
    %3 = vector.load %arg3[%c0, %c0_1, %c0_2] : memref<1x8x64xf32, #tpu.memory_space<vmem>>, vector<1x8x64xf32>
    %4 = vector.shape_cast %3 : vector<1x8x64xf32> to vector<8x64xf32>
    %c0_3 = arith.constant 0 : index
    %c0_4 = arith.constant 0 : index
    %c0_5 = arith.constant 0 : index
    %5 = vector.load %arg4[%c0_3, %c0_4, %c0_5] : memref<1x8x64xf32, #tpu.memory_space<vmem>>, vector<1x8x64xf32>
    %6 = vector.shape_cast %5 : vector<1x8x64xf32> to vector<8x64xf32>
    %c0_6 = arith.constant 0 : index
    %c0_7 = arith.constant 0 : index
    %c0_8 = arith.constant 0 : index
    %7 = vector.load %arg5[%c0_6, %c0_7, %c0_8] : memref<1x8x64xf32, #tpu.memory_space<vmem>>, vector<1x8x64xf32>
    %8 = vector.shape_cast %7 : vector<1x8x64xf32> to vector<8x64xf32>
    %9 = vector.extract_strided_slice %4 {offsets = [0, 0], sizes = [8, 16], strides = [1, 1]} : vector<8x64xf32> to vector<8x16xf32>
    %10 = vector.extract_strided_slice %6 {offsets = [0, 0], sizes = [8, 16], strides = [1, 1]} : vector<8x64xf32> to vector<8x16xf32>
    %11 = vector.extract_strided_slice %8 {offsets = [0, 0], sizes = [8, 16], strides = [1, 1]} : vector<8x64xf32> to vector<8x16xf32>
    %cst = arith.constant dense<0.000000e+00> : vector<8x8xf32>
    %12 = tpu.matmul %9, %10, %cst {dimension_numbers = #tpu.dot_dimension_numbers<[1], [1], [0], [0], [0, 0, 1, 0], [], []>} : vector<8x16xf32>, vector<8x16xf32>, vector<8x8xf32> -> vector<8x8xf32>
    %c0_9 = arith.constant 0 : index
    %c0_10 = arith.constant 0 : index
    %c0_11 = arith.constant 0 : index
    %13 = vector.load %arg7[%c0_9, %c0_10, %c0_11] : memref<4x8x1xf32, #tpu.memory_space<vmem>>, vector<1x8x1xf32>
    %14 = vector.shape_cast %13 : vector<1x8x1xf32> to vector<8x1xf32>
    %cst_12 = arith.constant dense<0xFF800000> : vector<8xf32>
    %15 = vector.multi_reduction <maximumf>, %12, %cst_12 [1] : vector<8x8xf32> to vector<8xf32>
    %16 = vector.shape_cast %15 : vector<8xf32> to vector<8x1xf32>
    %17 = arith.maximumf %14, %16 : vector<8x1xf32>
    %18 = arith.subf %14, %17 : vector<8x1xf32>
    %19 = math.exp %18 : vector<8x1xf32>
    %20 = vector.broadcast %17 : vector<8x1xf32> to vector<8x8xf32>
    %21 = arith.subf %12, %20 : vector<8x8xf32>
    %22 = math.exp %21 : vector<8x8xf32>
    %c0_13 = arith.constant 0 : index
    %c0_14 = arith.constant 0 : index
    %c0_15 = arith.constant 0 : index
    %23 = vector.load %arg8[%c0_13, %c0_14, %c0_15] : memref<4x8x1xf32, #tpu.memory_space<vmem>>, vector<1x8x1xf32>
    %24 = vector.shape_cast %23 : vector<1x8x1xf32> to vector<8x1xf32>
    %25 = arith.mulf %19, %24 : vector<8x1xf32>
    %cst_16 = arith.constant dense<0.000000e+00> : vector<8xf32>
    %26 = vector.multi_reduction <add>, %22, %cst_16 [1] : vector<8x8xf32> to vector<8xf32>
    %27 = vector.shape_cast %26 : vector<8xf32> to vector<8x1xf32>
    %28 = arith.addf %25, %27 : vector<8x1xf32>
    %c0_17 = arith.constant 0 : index
    %c0_18 = arith.constant 0 : index
    %c0_19 = arith.constant 0 : index
    %29 = vector.load %arg8[%c0_17, %c0_18, %c0_19] : memref<4x8x1xf32, #tpu.memory_space<vmem>>, vector<1x8x1xf32>
    %30 = vector.shape_cast %29 : vector<1x8x1xf32> to vector<8x1xf32>
    %31 = vector.shape_cast %28 : vector<8x1xf32> to vector<1x8x1xf32>
    tpu.vector_store %arg8[%c0_17, %c0_18, %c0_19], %31 {strides = array<i32>} : memref<4x8x1xf32, #tpu.memory_space<vmem>>, vector<1x8x1xf32>,
    %c0_20 = arith.constant 0 : index
    %c0_21 = arith.constant 0 : index
    %c0_22 = arith.constant 0 : index
    %32 = vector.load %arg9[%c0_20, %c0_21, %c0_22] : memref<4x8x16xf32, #tpu.memory_space<vmem>>, vector<1x8x16xf32>
    %33 = vector.shape_cast %32 : vector<1x8x16xf32> to vector<8x16xf32>
    %34 = vector.broadcast %19 : vector<8x1xf32> to vector<8x16xf32>
    %35 = arith.mulf %34, %33 : vector<8x16xf32>
    %cst_23 = arith.constant dense<0.000000e+00> : vector<8x16xf32>
    %36 = tpu.matmul %22, %11, %cst_23 {dimension_numbers = #tpu.dot_dimension_numbers<[1], [0], [0], [1], [0, 0, 1, 1], [], []>} : vector<8x8xf32>, vector<8x16xf32>, vector<8x16xf32> -> vector<8x16xf32>
    %37 = arith.addf %35, %36 : vector<8x16xf32>
    %c0_24 = arith.constant 0 : index
    %c0_25 = arith.constant 0 : index
    %c0_26 = arith.constant 0 : index
    %38 = vector.load %arg9[%c0_24, %c0_25, %c0_26] : memref<4x8x16xf32, #tpu.memory_space<vmem>>, vector<1x8x16xf32>
    %39 = vector.shape_cast %38 : vector<1x8x16xf32> to vector<8x16xf32>
    %40 = vector.shape_cast %37 : vector<8x16xf32> to vector<1x8x16xf32>
    tpu.vector_store %arg9[%c0_24, %c0_25, %c0_26], %40 {strides = array<i32>} : memref<4x8x16xf32, #tpu.memory_space<vmem>>, vector<1x8x16xf32>,
    %c0_27 = arith.constant 0 : index
    %c0_28 = arith.constant 0 : index
    %c0_29 = arith.constant 0 : index
    %41 = vector.load %arg7[%c0_27, %c0_28, %c0_29] : memref<4x8x1xf32, #tpu.memory_space<vmem>>, vector<1x8x1xf32>
    %42 = vector.shape_cast %41 : vector<1x8x1xf32> to vector<8x1xf32>
    %43 = vector.shape_cast %17 : vector<8x1xf32> to vector<1x8x1xf32>
    tpu.vector_store %arg7[%c0_27, %c0_28, %c0_29], %43 {strides = array<i32>} : memref<4x8x1xf32, #tpu.memory_space<vmem>>, vector<1x8x1xf32>,
    %44 = vector.extract_strided_slice %4 {offsets = [0, 16], sizes = [8, 16], strides = [1, 1]} : vector<8x64xf32> to vector<8x16xf32>
    %45 = vector.extract_strided_slice %6 {offsets = [0, 16], sizes = [8, 16], strides = [1, 1]} : vector<8x64xf32> to vector<8x16xf32>
    %46 = vector.extract_strided_slice %8 {offsets = [0, 16], sizes = [8, 16], strides = [1, 1]} : vector<8x64xf32> to vector<8x16xf32>
    %cst_30 = arith.constant dense<0.000000e+00> : vector<8x8xf32>
    %47 = tpu.matmul %44, %45, %cst_30 {dimension_numbers = #tpu.dot_dimension_numbers<[1], [1], [0], [0], [0, 0, 1, 0], [], []>} : vector<8x16xf32>, vector<8x16xf32>, vector<8x8xf32> -> vector<8x8xf32>
    %c1 = arith.constant 1 : index
    %c0_31 = arith.constant 0 : index
    %c0_32 = arith.constant 0 : index
    %48 = vector.load %arg7[%c1, %c0_31, %c0_32] : memref<4x8x1xf32, #tpu.memory_space<vmem>>, vector<1x8x1xf32>
    %49 = vector.shape_cast %48 : vector<1x8x1xf32> to vector<8x1xf32>
    %cst_33 = arith.constant dense<0xFF800000> : vector<8xf32>
    %50 = vector.multi_reduction <maximumf>, %47, %cst_33 [1] : vector<8x8xf32> to vector<8xf32>
    %51 = vector.shape_cast %50 : vector<8xf32> to vector<8x1xf32>
    %52 = arith.maximumf %49, %51 : vector<8x1xf32>
    %53 = arith.subf %49, %52 : vector<8x1xf32>
    %54 = math.exp %53 : vector<8x1xf32>
    %55 = vector.broadcast %52 : vector<8x1xf32> to vector<8x8xf32>
    %56 = arith.subf %47, %55 : vector<8x8xf32>
    %57 = math.exp %56 : vector<8x8xf32>
    %c1_34 = arith.constant 1 : index
    %c0_35 = arith.constant 0 : index
    %c0_36 = arith.constant 0 : index
    %58 = vector.load %arg8[%c1_34, %c0_35, %c0_36] : memref<4x8x1xf32, #tpu.memory_space<vmem>>, vector<1x8x1xf32>
    %59 = vector.shape_cast %58 : vector<1x8x1xf32> to vector<8x1xf32>
    %60 = arith.mulf %54, %59 : vector<8x1xf32>
    %cst_37 = arith.constant dense<0.000000e+00> : vector<8xf32>
    %61 = vector.multi_reduction <add>, %57, %cst_37 [1] : vector<8x8xf32> to vector<8xf32>
    %62 = vector.shape_cast %61 : vector<8xf32> to vector<8x1xf32>
    %63 = arith.addf %60, %62 : vector<8x1xf32>
    %c1_38 = arith.constant 1 : index
    %c0_39 = arith.constant 0 : index
    %c0_40 = arith.constant 0 : index
    %64 = vector.load %arg8[%c1_38, %c0_39, %c0_40] : memref<4x8x1xf32, #tpu.memory_space<vmem>>, vector<1x8x1xf32>
    %65 = vector.shape_cast %64 : vector<1x8x1xf32> to vector<8x1xf32>
    %66 = vector.shape_cast %63 : vector<8x1xf32> to vector<1x8x1xf32>
    tpu.vector_store %arg8[%c1_38, %c0_39, %c0_40], %66 {strides = array<i32>} : memref<4x8x1xf32, #tpu.memory_space<vmem>>, vector<1x8x1xf32>,
    %c1_41 = arith.constant 1 : index
    %c0_42 = arith.constant 0 : index
    %c0_43 = arith.constant 0 : index
    %67 = vector.load %arg9[%c1_41, %c0_42, %c0_43] : memref<4x8x16xf32, #tpu.memory_space<vmem>>, vector<1x8x16xf32>
    %68 = vector.shape_cast %67 : vector<1x8x16xf32> to vector<8x16xf32>
    %69 = vector.broadcast %54 : vector<8x1xf32> to vector<8x16xf32>
    %70 = arith.mulf %69, %68 : vector<8x16xf32>
    %cst_44 = arith.constant dense<0.000000e+00> : vector<8x16xf32>
    %71 = tpu.matmul %57, %46, %cst_44 {dimension_numbers = #tpu.dot_dimension_numbers<[1], [0], [0], [1], [0, 0, 1, 1], [], []>} : vector<8x8xf32>, vector<8x16xf32>, vector<8x16xf32> -> vector<8x16xf32>
    %72 = arith.addf %70, %71 : vector<8x16xf32>
    %c1_45 = arith.constant 1 : index
    %c0_46 = arith.constant 0 : index
    %c0_47 = arith.constant 0 : index
    %73 = vector.load %arg9[%c1_45, %c0_46, %c0_47] : memref<4x8x16xf32, #tpu.memory_space<vmem>>, vector<1x8x16xf32>
    %74 = vector.shape_cast %73 : vector<1x8x16xf32> to vector<8x16xf32>
    %75 = vector.shape_cast %72 : vector<8x16xf32> to vector<1x8x16xf32>
    tpu.vector_store %arg9[%c1_45, %c0_46, %c0_47], %75 {strides = array<i32>} : memref<4x8x16xf32, #tpu.memory_space<vmem>>, vector<1x8x16xf32>,
    %c1_48 = arith.constant 1 : index
    %c0_49 = arith.constant 0 : index
    %c0_50 = arith.constant 0 : index
    %76 = vector.load %arg7[%c1_48, %c0_49, %c0_50] : memref<4x8x1xf32, #tpu.memory_space<vmem>>, vector<1x8x1xf32>
    %77 = vector.shape_cast %76 : vector<1x8x1xf32> to vector<8x1xf32>
    %78 = vector.shape_cast %52 : vector<8x1xf32> to vector<1x8x1xf32>
    tpu.vector_store %arg7[%c1_48, %c0_49, %c0_50], %78 {strides = array<i32>} : memref<4x8x1xf32, #tpu.memory_space<vmem>>, vector<1x8x1xf32>,
    %79 = vector.extract_strided_slice %4 {offsets = [0, 32], sizes = [8, 16], strides = [1, 1]} : vector<8x64xf32> to vector<8x16xf32>
    %80 = vector.extract_strided_slice %6 {offsets = [0, 32], sizes = [8, 16], strides = [1, 1]} : vector<8x64xf32> to vector<8x16xf32>
    %81 = vector.extract_strided_slice %8 {offsets = [0, 32], sizes = [8, 16], strides = [1, 1]} : vector<8x64xf32> to vector<8x16xf32>
    %cst_51 = arith.constant dense<0.000000e+00> : vector<8x8xf32>
    %82 = tpu.matmul %79, %80, %cst_51 {dimension_numbers = #tpu.dot_dimension_numbers<[1], [1], [0], [0], [0, 0, 1, 0], [], []>} : vector<8x16xf32>, vector<8x16xf32>, vector<8x8xf32> -> vector<8x8xf32>
    %c2 = arith.constant 2 : index
    %c0_52 = arith.constant 0 : index
    %c0_53 = arith.constant 0 : index
    %83 = vector.load %arg7[%c2, %c0_52, %c0_53] : memref<4x8x1xf32, #tpu.memory_space<vmem>>, vector<1x8x1xf32>
    %84 = vector.shape_cast %83 : vector<1x8x1xf32> to vector<8x1xf32>
    %cst_54 = arith.constant dense<0xFF800000> : vector<8xf32>
    %85 = vector.multi_reduction <maximumf>, %82, %cst_54 [1] : vector<8x8xf32> to vector<8xf32>
    %86 = vector.shape_cast %85 : vector<8xf32> to vector<8x1xf32>
    %87 = arith.maximumf %84, %86 : vector<8x1xf32>
    %88 = arith.subf %84, %87 : vector<8x1xf32>
    %89 = math.exp %88 : vector<8x1xf32>
    %90 = vector.broadcast %87 : vector<8x1xf32> to vector<8x8xf32>
    %91 = arith.subf %82, %90 : vector<8x8xf32>
    %92 = math.exp %91 : vector<8x8xf32>
    %c2_55 = arith.constant 2 : index
    %c0_56 = arith.constant 0 : index
    %c0_57 = arith.constant 0 : index
    %93 = vector.load %arg8[%c2_55, %c0_56, %c0_57] : memref<4x8x1xf32, #tpu.memory_space<vmem>>, vector<1x8x1xf32>
    %94 = vector.shape_cast %93 : vector<1x8x1xf32> to vector<8x1xf32>
    %95 = arith.mulf %89, %94 : vector<8x1xf32>
    %cst_58 = arith.constant dense<0.000000e+00> : vector<8xf32>
    %96 = vector.multi_reduction <add>, %92, %cst_58 [1] : vector<8x8xf32> to vector<8xf32>
    %97 = vector.shape_cast %96 : vector<8xf32> to vector<8x1xf32>
    %98 = arith.addf %95, %97 : vector<8x1xf32>
    %c2_59 = arith.constant 2 : index
    %c0_60 = arith.constant 0 : index
    %c0_61 = arith.constant 0 : index
    %99 = vector.load %arg8[%c2_59, %c0_60, %c0_61] : memref<4x8x1xf32, #tpu.memory_space<vmem>>, vector<1x8x1xf32>
    %100 = vector.shape_cast %99 : vector<1x8x1xf32> to vector<8x1xf32>
    %101 = vector.shape_cast %98 : vector<8x1xf32> to vector<1x8x1xf32>
    tpu.vector_store %arg8[%c2_59, %c0_60, %c0_61], %101 {strides = array<i32>} : memref<4x8x1xf32, #tpu.memory_space<vmem>>, vector<1x8x1xf32>,
    %c2_62 = arith.constant 2 : index
    %c0_63 = arith.constant 0 : index
    %c0_64 = arith.constant 0 : index
    %102 = vector.load %arg9[%c2_62, %c0_63, %c0_64] : memref<4x8x16xf32, #tpu.memory_space<vmem>>, vector<1x8x16xf32>
    %103 = vector.shape_cast %102 : vector<1x8x16xf32> to vector<8x16xf32>
    %104 = vector.broadcast %89 : vector<8x1xf32> to vector<8x16xf32>
    %105 = arith.mulf %104, %103 : vector<8x16xf32>
    %cst_65 = arith.constant dense<0.000000e+00> : vector<8x16xf32>
    %106 = tpu.matmul %92, %81, %cst_65 {dimension_numbers = #tpu.dot_dimension_numbers<[1], [0], [0], [1], [0, 0, 1, 1], [], []>} : vector<8x8xf32>, vector<8x16xf32>, vector<8x16xf32> -> vector<8x16xf32>
    %107 = arith.addf %105, %106 : vector<8x16xf32>
    %c2_66 = arith.constant 2 : index
    %c0_67 = arith.constant 0 : index
    %c0_68 = arith.constant 0 : index
    %108 = vector.load %arg9[%c2_66, %c0_67, %c0_68] : memref<4x8x16xf32, #tpu.memory_space<vmem>>, vector<1x8x16xf32>
    %109 = vector.shape_cast %108 : vector<1x8x16xf32> to vector<8x16xf32>
    %110 = vector.shape_cast %107 : vector<8x16xf32> to vector<1x8x16xf32>
    tpu.vector_store %arg9[%c2_66, %c0_67, %c0_68], %110 {strides = array<i32>} : memref<4x8x16xf32, #tpu.memory_space<vmem>>, vector<1x8x16xf32>,
    %c2_69 = arith.constant 2 : index
    %c0_70 = arith.constant 0 : index
    %c0_71 = arith.constant 0 : index
    %111 = vector.load %arg7[%c2_69, %c0_70, %c0_71] : memref<4x8x1xf32, #tpu.memory_space<vmem>>, vector<1x8x1xf32>
    %112 = vector.shape_cast %111 : vector<1x8x1xf32> to vector<8x1xf32>
    %113 = vector.shape_cast %87 : vector<8x1xf32> to vector<1x8x1xf32>
    tpu.vector_store %arg7[%c2_69, %c0_70, %c0_71], %113 {strides = array<i32>} : memref<4x8x1xf32, #tpu.memory_space<vmem>>, vector<1x8x1xf32>,
    %114 = vector.extract_strided_slice %4 {offsets = [0, 48], sizes = [8, 16], strides = [1, 1]} : vector<8x64xf32> to vector<8x16xf32>
    %115 = vector.extract_strided_slice %6 {offsets = [0, 48], sizes = [8, 16], strides = [1, 1]} : vector<8x64xf32> to vector<8x16xf32>
    %116 = vector.extract_strided_slice %8 {offsets = [0, 48], sizes = [8, 16], strides = [1, 1]} : vector<8x64xf32> to vector<8x16xf32>
    %cst_72 = arith.constant dense<0.000000e+00> : vector<8x8xf32>
    %117 = tpu.matmul %114, %115, %cst_72 {dimension_numbers = #tpu.dot_dimension_numbers<[1], [1], [0], [0], [0, 0, 1, 0], [], []>} : vector<8x16xf32>, vector<8x16xf32>, vector<8x8xf32> -> vector<8x8xf32>
    %c3 = arith.constant 3 : index
    %c0_73 = arith.constant 0 : index
    %c0_74 = arith.constant 0 : index
    %118 = vector.load %arg7[%c3, %c0_73, %c0_74] : memref<4x8x1xf32, #tpu.memory_space<vmem>>, vector<1x8x1xf32>
    %119 = vector.shape_cast %118 : vector<1x8x1xf32> to vector<8x1xf32>
    %cst_75 = arith.constant dense<0xFF800000> : vector<8xf32>
    %120 = vector.multi_reduction <maximumf>, %117, %cst_75 [1] : vector<8x8xf32> to vector<8xf32>
    %121 = vector.shape_cast %120 : vector<8xf32> to vector<8x1xf32>
    %122 = arith.maximumf %119, %121 : vector<8x1xf32>
    %123 = arith.subf %119, %122 : vector<8x1xf32>
    %124 = math.exp %123 : vector<8x1xf32>
    %125 = vector.broadcast %122 : vector<8x1xf32> to vector<8x8xf32>
    %126 = arith.subf %117, %125 : vector<8x8xf32>
    %127 = math.exp %126 : vector<8x8xf32>
    %c3_76 = arith.constant 3 : index
    %c0_77 = arith.constant 0 : index
    %c0_78 = arith.constant 0 : index
    %128 = vector.load %arg8[%c3_76, %c0_77, %c0_78] : memref<4x8x1xf32, #tpu.memory_space<vmem>>, vector<1x8x1xf32>
    %129 = vector.shape_cast %128 : vector<1x8x1xf32> to vector<8x1xf32>
    %130 = arith.mulf %124, %129 : vector<8x1xf32>
    %cst_79 = arith.constant dense<0.000000e+00> : vector<8xf32>
    %131 = vector.multi_reduction <add>, %127, %cst_79 [1] : vector<8x8xf32> to vector<8xf32>
    %132 = vector.shape_cast %131 : vector<8xf32> to vector<8x1xf32>
    %133 = arith.addf %130, %132 : vector<8x1xf32>
    %c3_80 = arith.constant 3 : index
    %c0_81 = arith.constant 0 : index
    %c0_82 = arith.constant 0 : index
    %134 = vector.load %arg8[%c3_80, %c0_81, %c0_82] : memref<4x8x1xf32, #tpu.memory_space<vmem>>, vector<1x8x1xf32>
    %135 = vector.shape_cast %134 : vector<1x8x1xf32> to vector<8x1xf32>
    %136 = vector.shape_cast %133 : vector<8x1xf32> to vector<1x8x1xf32>
    tpu.vector_store %arg8[%c3_80, %c0_81, %c0_82], %136 {strides = array<i32>} : memref<4x8x1xf32, #tpu.memory_space<vmem>>, vector<1x8x1xf32>,
    %c3_83 = arith.constant 3 : index
    %c0_84 = arith.constant 0 : index
    %c0_85 = arith.constant 0 : index
    %137 = vector.load %arg9[%c3_83, %c0_84, %c0_85] : memref<4x8x16xf32, #tpu.memory_space<vmem>>, vector<1x8x16xf32>
    %138 = vector.shape_cast %137 : vector<1x8x16xf32> to vector<8x16xf32>
    %139 = vector.broadcast %124 : vector<8x1xf32> to vector<8x16xf32>
    %140 = arith.mulf %139, %138 : vector<8x16xf32>
    %cst_86 = arith.constant dense<0.000000e+00> : vector<8x16xf32>
    %141 = tpu.matmul %127, %116, %cst_86 {dimension_numbers = #tpu.dot_dimension_numbers<[1], [0], [0], [1], [0, 0, 1, 1], [], []>} : vector<8x8xf32>, vector<8x16xf32>, vector<8x16xf32> -> vector<8x16xf32>
    %142 = arith.addf %140, %141 : vector<8x16xf32>
    %c3_87 = arith.constant 3 : index
    %c0_88 = arith.constant 0 : index
    %c0_89 = arith.constant 0 : index
    %143 = vector.load %arg9[%c3_87, %c0_88, %c0_89] : memref<4x8x16xf32, #tpu.memory_space<vmem>>, vector<1x8x16xf32>
    %144 = vector.shape_cast %143 : vector<1x8x16xf32> to vector<8x16xf32>
    %145 = vector.shape_cast %142 : vector<8x16xf32> to vector<1x8x16xf32>
    tpu.vector_store %arg9[%c3_87, %c0_88, %c0_89], %145 {strides = array<i32>} : memref<4x8x16xf32, #tpu.memory_space<vmem>>, vector<1x8x16xf32>,
    %c3_90 = arith.constant 3 : index
    %c0_91 = arith.constant 0 : index
    %c0_92 = arith.constant 0 : index
    %146 = vector.load %arg7[%c3_90, %c0_91, %c0_92] : memref<4x8x1xf32, #tpu.memory_space<vmem>>, vector<1x8x1xf32>
    %147 = vector.shape_cast %146 : vector<1x8x1xf32> to vector<8x1xf32>
    %148 = vector.shape_cast %122 : vector<8x1xf32> to vector<1x8x1xf32>
    tpu.vector_store %arg7[%c3_90, %c0_91, %c0_92], %148 {strides = array<i32>} : memref<4x8x1xf32, #tpu.memory_space<vmem>>, vector<1x8x1xf32>,
    %c0_i32_93 = arith.constant 0 : i32
    %149 = arith.cmpi eq, %arg2, %c0_i32_93 : i32
    %150 = arith.extui %149 : i1 to i32
    %c0_i32_94 = arith.constant 0 : i32
    %151 = arith.cmpi ne, %150, %c0_i32_94 : i32
    scf.if %151 {
      %c0_95 = arith.constant 0 : index
      %c0_96 = arith.constant 0 : index
      %c0_97 = arith.constant 0 : index
      %152 = vector.load %arg8[%c0_95, %c0_96, %c0_97] : memref<4x8x1xf32, #tpu.memory_space<vmem>>, vector<1x8x1xf32>
      %153 = vector.shape_cast %152 : vector<1x8x1xf32> to vector<8x1xf32>
      %154 = tpu.reciprocal %153 {approx = true} : vector<8x1xf32> -> vector<8x1xf32>
      %155 = arith.mulf %153, %154 : vector<8x1xf32>
      %cst_98 = arith.constant 2.000000e+00 : f32
      %156 = vector.broadcast %cst_98 : f32 to vector<8x1xf32>
      %157 = arith.subf %156, %155 : vector<8x1xf32>
      %158 = arith.mulf %154, %157 : vector<8x1xf32>
      %c0_99 = arith.constant 0 : index
      %c0_100 = arith.constant 0 : index
      %c0_101 = arith.constant 0 : index
      %159 = vector.load %arg9[%c0_99, %c0_100, %c0_101] : memref<4x8x16xf32, #tpu.memory_space<vmem>>, vector<1x8x16xf32>
      %160 = vector.shape_cast %159 : vector<1x8x16xf32> to vector<8x16xf32>
      %161 = vector.broadcast %158 : vector<8x1xf32> to vector<8x16xf32>
      %162 = arith.mulf %160, %161 : vector<8x16xf32>
      %c1_102 = arith.constant 1 : index
      %c0_103 = arith.constant 0 : index
      %c0_104 = arith.constant 0 : index
      %163 = vector.load %arg8[%c1_102, %c0_103, %c0_104] : memref<4x8x1xf32, #tpu.memory_space<vmem>>, vector<1x8x1xf32>
      %164 = vector.shape_cast %163 : vector<1x8x1xf32> to vector<8x1xf32>
      %165 = tpu.reciprocal %164 {approx = true} : vector<8x1xf32> -> vector<8x1xf32>
      %166 = arith.mulf %164, %165 : vector<8x1xf32>
      %cst_105 = arith.constant 2.000000e+00 : f32
      %167 = vector.broadcast %cst_105 : f32 to vector<8x1xf32>
      %168 = arith.subf %167, %166 : vector<8x1xf32>
      %169 = arith.mulf %165, %168 : vector<8x1xf32>
      %c1_106 = arith.constant 1 : index
      %c0_107 = arith.constant 0 : index
      %c0_108 = arith.constant 0 : index
      %170 = vector.load %arg9[%c1_106, %c0_107, %c0_108] : memref<4x8x16xf32, #tpu.memory_space<vmem>>, vector<1x8x16xf32>
      %171 = vector.shape_cast %170 : vector<1x8x16xf32> to vector<8x16xf32>
      %172 = vector.broadcast %169 : vector<8x1xf32> to vector<8x16xf32>
      %173 = arith.mulf %171, %172 : vector<8x16xf32>
      %c2_109 = arith.constant 2 : index
      %c0_110 = arith.constant 0 : index
      %c0_111 = arith.constant 0 : index
      %174 = vector.load %arg8[%c2_109, %c0_110, %c0_111] : memref<4x8x1xf32, #tpu.memory_space<vmem>>, vector<1x8x1xf32>
      %175 = vector.shape_cast %174 : vector<1x8x1xf32> to vector<8x1xf32>
      %176 = tpu.reciprocal %175 {approx = true} : vector<8x1xf32> -> vector<8x1xf32>
      %177 = arith.mulf %175, %176 : vector<8x1xf32>
      %cst_112 = arith.constant 2.000000e+00 : f32
      %178 = vector.broadcast %cst_112 : f32 to vector<8x1xf32>
      %179 = arith.subf %178, %177 : vector<8x1xf32>
      %180 = arith.mulf %176, %179 : vector<8x1xf32>
      %c2_113 = arith.constant 2 : index
      %c0_114 = arith.constant 0 : index
      %c0_115 = arith.constant 0 : index
      %181 = vector.load %arg9[%c2_113, %c0_114, %c0_115] : memref<4x8x16xf32, #tpu.memory_space<vmem>>, vector<1x8x16xf32>
      %182 = vector.shape_cast %181 : vector<1x8x16xf32> to vector<8x16xf32>
      %183 = vector.broadcast %180 : vector<8x1xf32> to vector<8x16xf32>
      %184 = arith.mulf %182, %183 : vector<8x16xf32>
      %c3_116 = arith.constant 3 : index
      %c0_117 = arith.constant 0 : index
      %c0_118 = arith.constant 0 : index
      %185 = vector.load %arg8[%c3_116, %c0_117, %c0_118] : memref<4x8x1xf32, #tpu.memory_space<vmem>>, vector<1x8x1xf32>
      %186 = vector.shape_cast %185 : vector<1x8x1xf32> to vector<8x1xf32>
      %187 = tpu.reciprocal %186 {approx = true} : vector<8x1xf32> -> vector<8x1xf32>
      %188 = arith.mulf %186, %187 : vector<8x1xf32>
      %cst_119 = arith.constant 2.000000e+00 : f32
      %189 = vector.broadcast %cst_119 : f32 to vector<8x1xf32>
      %190 = arith.subf %189, %188 : vector<8x1xf32>
      %191 = arith.mulf %187, %190 : vector<8x1xf32>
      %c3_120 = arith.constant 3 : index
      %c0_121 = arith.constant 0 : index
      %c0_122 = arith.constant 0 : index
      %192 = vector.load %arg9[%c3_120, %c0_121, %c0_122] : memref<4x8x16xf32, #tpu.memory_space<vmem>>, vector<1x8x16xf32>
      %193 = vector.shape_cast %192 : vector<1x8x16xf32> to vector<8x16xf32>
      %194 = vector.broadcast %191 : vector<8x1xf32> to vector<8x16xf32>
      %195 = arith.mulf %193, %194 : vector<8x16xf32>
      %196 = tpu.concatenate %162, %173, %184, %195 in 1 : vector<8x16xf32>, vector<8x16xf32>, vector<8x16xf32>, vector<8x16xf32> -> vector<8x64xf32>
      %c0_123 = arith.constant 0 : index
      %c0_124 = arith.constant 0 : index
      %c0_125 = arith.constant 0 : index
      %197 = vector.load %arg6[%c0_123, %c0_124, %c0_125] : memref<1x8x64xf32, #tpu.memory_space<vmem>>, vector<1x8x64xf32>
      %198 = vector.shape_cast %197 : vector<1x8x64xf32> to vector<8x64xf32>
      %199 = vector.shape_cast %196 : vector<8x64xf32> to vector<1x8x64xf32>
      tpu.vector_store %arg6[%c0_123, %c0_124, %c0_125], %199 {strides = array<i32>} : memref<1x8x64xf32, #tpu.memory_space<vmem>>, vector<1x8x64xf32>,
    } else {
    }
    return
  }
  func.func @transform_0(%arg0: i32, %arg1: i32, %arg2: i32) -> (i32, i32, i32) {
    %c0_i32 = arith.constant 0 : i32
    %c0_i32_0 = arith.constant 0 : i32
    return %arg0, %arg1, %c0_i32 : i32, i32, i32
  }
  func.func @transform_1(%arg0: i32, %arg1: i32, %arg2: i32) -> (i32, i32, i32) {
    %c0_i32 = arith.constant 0 : i32
    %c0_i32_0 = arith.constant 0 : i32
    return %arg0, %arg2, %c0_i32 : i32, i32, i32
  }
  func.func @transform_2(%arg0: i32, %arg1: i32, %arg2: i32) -> (i32, i32, i32) {
    %c0_i32 = arith.constant 0 : i32
    %c0_i32_0 = arith.constant 0 : i32
    return %arg0, %arg2, %c0_i32 : i32, i32, i32
  }
  func.func @transform_3(%arg0: i32, %arg1: i32, %arg2: i32) -> (i32, i32, i32) {
    %c0_i32 = arith.constant 0 : i32
    %c0_i32_0 = arith.constant 0 : i32
    return %arg0, %arg1, %c0_i32 : i32, i32, i32
  }
}

</mosaic_0001>

<llo_original>
// kernel: attention_forward.3
$region0: #{attention_forward.3}
  #allocation0 [shape = 'u32[]', space=smem, size = 0x4, offset = 0x4, fixed_abs, tag = 'smem constant byte address 0x4 - core index']
  #allocation1 [shape = 'u32[144,128]{1,0:T(1,128)}', space=vmem, size = 0x12000, scoped, tag = 'internal scratch']
  %s0 = inlined_call_operand.hbm [shape: f32[16,32], index: 0, kind: input, shape index: {}]
  %s1 = inlined_call_operand.hbm [shape: f32[32,192], index: 1, kind: input, shape index: {}]
  %s2 = inlined_call_operand.vmem [shape: f32[16,64], index: 2, kind: output, shape index: {0}]
  %s3 = inlined_call_operand.vmem [shape: f32[16,64], index: 3, kind: output, shape index: {1}]
  %s4 = inlined_call_operand.vmem [shape: f32[16,64], index: 4, kind: output, shape index: {2}]
  %5 = xla_tuple %s2, %s3, %s4
  %s6 = sld [smem:[#allocation0]]
  $region42: #{attention_forward.3} parent=0
    _
  %s8 = ssub.s32 1, %s6
  %s9 = scalar_select 0, %s8, %s6
  $region1: #{attention_forward.3} parent=0
    #allocation2 [shape = 'u8[8192]{0}', space=vmem, size = 0x2000, scoped, tag = 'input window, operand 0, single buffered']
    #allocation3 [shape = 's32[1]{0}', space=sflag, size = 0x4, scoped, tag = 'scoped memory for attention_forward.3']
    #allocation4 [shape = 'u8[32768]{0}', space=vmem, size = 0x8000, scoped, tag = 'input window, operand 1, single buffered']
    #allocation5 [shape = 's32[1]{0}', space=sflag, size = 0x4, scoped, tag = 'scoped memory for attention_forward.3']
    %10 = vsyncpa [#allocation3], 0
    %11 = vsyncpa [#allocation5], 0
    // Predicated region
    $region2: #{attention_forward.3} parent=1 // pred_check
      _
    $region3: #{attention_forward.3} parent=1 // pred_check_branch
      %13 = sbr.rel (0) target = $region5
    $region4: #{attention_forward.3} parent=1 // pred_region
      %s15 = ssub.s32 256, 256
      %16 = vsyncadd [#allocation3], %s15
      %s17 = sshll.u32 [#allocation2], 4
      %s18 = int_to_ptr.vmem [resolvable:$true] %s17
      %23 = dma.hbm_to_vmem [thread:$0]  %s0, 256, %s18, [#allocation3], 128, 128, 8
    $region5: #{attention_forward.3} parent=1 // pred_fallthru
      _
    // Predicated region
    $region6: #{attention_forward.3} parent=1 // pred_check
      _
    $region7: #{attention_forward.3} parent=1 // pred_check_branch
      %25 = sbr.rel (0) target = $region9
    $region8: #{attention_forward.3} parent=1 // pred_region
      %s27 = ssub.s32 1024, 1024
      %28 = vsyncadd [#allocation5], %s27
      %s29 = sshll.u32 [#allocation4], 4
      %s30 = int_to_ptr.vmem [resolvable:$true] %s29
      %35 = dma.hbm_to_vmem [thread:$0]  %s1, 1024, %s30, [#allocation5], 256, 256, 16
    $region9: #{attention_forward.3} parent=1 // pred_fallthru
      _
    // Predicated region
    $region10: #{attention_forward.3} parent=1 // pred_check
      _
    $region11: #{attention_forward.3} parent=1 // pred_check_branch
      %37 = sbr.rel (0) target = $region13
    $region12: #{attention_forward.3} parent=1 // pred_region
      %38 = dma.done [#allocation3], 256
    $region13: #{attention_forward.3} parent=1 // pred_fallthru
      _
    // Predicated region
    $region14: #{attention_forward.3} parent=1 // pred_check
      _
    $region15: #{attention_forward.3} parent=1 // pred_check_branch
      %40 = sbr.rel (0) target = $region17
    $region16: #{attention_forward.3} parent=1 // pred_region
      %41 = dma.done [#allocation5], 1024
    $region17: #{attention_forward.3} parent=1 // pred_fallthru
      _
    %v42 = vld [vmem:[#allocation2] sm:$0xff]
    %v43 = vld [vmem:[#allocation2 + $0x8] sm:$0xff]
    %v44 = vld [vmem:[#allocation4] sm:$0xff]
    %v45 = vld [vmem:[#allocation4 + $0x8] sm:$0xff]
    %v46 = vld [vmem:[#allocation4 + $0x10] sm:$0xff]
    %v47 = vld [vmem:[#allocation4 + $0x18] sm:$0xff]
    %v48 = vld [vmem:[#allocation4 + $0x20] sm:$0xff]
    %v49 = vld [vmem:[#allocation4 + $0x28] sm:$0xff]
    %v50 = vld [vmem:[#allocation4 + $0x30] sm:$0xff]
    %v51 = vld [vmem:[#allocation4 + $0x38] sm:$0xff]
    %vm52 = vcmask 261120
    %v54 = vsel %vm52, %v42, 0
    %v57 = vsel %vm52, %v43, 0
    %59 = vmatprep.subr.mxu0 %v45
    %60 = vmatpush1.msra.mxu0 %v44
    %61 = vmatprep.subr.mxu0 %v47
    %62 = vmatpush1.msra.mxu0 %v46
    %63 = vmatprep.subr.mxu0 %v49
    %64 = vmatpush1.msra.mxu0 %v48
    %65 = vmatprep.subr.mxu0 %v51
    %66 = vmatpush1.msra.mxu0 %v50
    %67 = vmatprep.subr.mxu0 0.0
    %68 = vmatpush1.msra.mxu0 0.0
    %69 = vmatprep.subr.mxu0 0.0
    %70 = vmatpush1.msra.mxu0 0.0
    %71 = vmatprep.subr.mxu0 0.0
    %72 = vmatpush1.msra.mxu0 0.0
    %73 = vmatprep.subr.mxu0 0.0
    %74 = vmatpush1.msra.mxu0 0.0
    %75 = vmatprep.subr.mxu0 0.0
    %76 = vmatpush1.msra.mxu0 0.0
    %77 = vmatprep.subr.mxu0 0.0
    %78 = vmatpush1.msra.mxu0 0.0
    %79 = vmatprep.subr.mxu0 0.0
    %80 = vmatpush1.msra.mxu0 0.0
    %81 = vmatprep.subr.mxu0 0.0
    %82 = vmatpush1.msra.mxu0 0.0
    %83 = vmatprep.subr.mxu0 0.0
    %84 = vmatpush1.msra.mxu0 0.0
    %85 = vmatprep.subr.mxu0 0.0
    %86 = vmatpush1.msra.mxu0 0.0
    %87 = vmatprep.subr.mxu0 0.0
    %88 = vmatpush1.msra.mxu0 0.0
    %89 = vmatprep.subr.mxu0 0.0
    %90 = vmatpush1.msra.mxu0 0.0
    %91 = vmatprep.subr.mxu0 0.0
    %92 = vmatpush1.msra.mxu0 0.0
    %93 = vmatprep.subr.mxu0 0.0
    %94 = vmatpush1.msra.mxu0 0.0
    %95 = vmatprep.subr.mxu0 0.0
    %96 = vmatpush1.msra.mxu0 0.0
    %97 = vmatprep.subr.mxu0 0.0
    %98 = vmatpush1.msra.mxu0 0.0
    %99 = vmatprep.subr.mxu0 0.0
    %100 = vmatpush1.msra.mxu0 0.0
    %101 = vmatprep.subr.mxu0 0.0
    %102 = vmatpush1.msra.mxu0 0.0
    %103 = vmatprep.subr.mxu0 0.0
    %104 = vmatpush1.msra.mxu0 0.0
    %105 = vmatprep.subr.mxu0 0.0
    %106 = vmatpush1.msra.mxu0 0.0
    %107 = vmatprep.subr.mxu0 0.0
    %108 = vmatpush1.msra.mxu0 0.0
    %109 = vmatprep.subr.mxu0 0.0
    %110 = vmatpush1.msra.mxu0 0.0
    %111 = vmatprep.subr.mxu0 0.0
    %112 = vmatpush1.msra.mxu0 0.0
    %113 = vmatprep.subr.mxu0 0.0
    %114 = vmatpush1.msra.mxu0 0.0
    %115 = vmatprep.subr.mxu0 0.0
    %116 = vmatpush1.msra.mxu0 0.0
    %117 = vmatprep.subr.mxu0 0.0
    %118 = vmatpush1.msra.mxu0 0.0
    %119 = vmatprep.subr.mxu0 0.0
    %120 = vmatpush1.msra.mxu0 0.0
    %121 = vmatprep.subr.mxu0 0.0
    %122 = vmatpush1.msra.mxu0 0.0
    %123 = vmatprep.mubr.f32.mxu0 0.0
    %124 = vmatmul.mubr.f32.gmra.mrb[0].mxu0 %v54
    %v125 = vpop.f32.mrb[0].mxu0
    %v126 = vadd.f32 0.0, %v125
    %v127 = vpop.f32.mrb[0].mxu0
    %v128 = vadd.f32 0.0, %v127
    %129 = vmatprep.mubr.f32.mxu0 0.0
    %130 = vmatmul.mubr.f32.gmra.mrb[0].mxu0 %v57
    %v131 = vpop.f32.mrb[0].mxu0
    %v132 = vadd.f32 0.0, %v131
    %v133 = vpop.f32.mrb[0].mxu0
    %v134 = vadd.f32 0.0, %v133
    %135 = vdwg.mxu0
    %v136 = vmul.f32 %v126, 0.17677669
    %v137 = vmul.f32 %v132, 0.17677669
    %vm138 = vcmask 523264
    %139 = vst.msk [vmem:[%s2] sm:$0xff] %vm138, %v136
    %140 = vst.msk [vmem:[%s2 + $0x8] sm:$0xff] %vm138, %v137
    %143 = vrot.lane.b32.xlu0 %v126, 64
    %v144 = vpop.permute.xlu0 %143
    %145 = vrot.lane.b32.xlu0 %v132, 64
    %v146 = vpop.permute.xlu0 %145
    %149 = vst.msk [vmem:[%s3] sm:$0xff] %vm138, %v144
    %150 = vst.msk [vmem:[%s3 + $0x8] sm:$0xff] %vm138, %v146
    %151 = vst.msk [vmem:[%s4] sm:$0xff] %vm138, %v128
    %152 = vst.msk [vmem:[%s4 + $0x8] sm:$0xff] %vm138, %v134
    // Predicated region
    $region18: #{attention_forward.3} parent=1 // pred_check
      _
    $region19: #{attention_forward.3} parent=1 // pred_check_branch
      %154 = sbr.rel (0) target = $region21
    $region20: #{attention_forward.3} parent=1 // pred_region
      _
    $region21: #{attention_forward.3} parent=1 // pred_fallthru
      _
    // Predicated region
    $region22: #{attention_forward.3} parent=1 // pred_check
      _
    $region23: #{attention_forward.3} parent=1 // pred_check_branch
      %156 = sbr.rel (0) target = $region25
    $region24: #{attention_forward.3} parent=1 // pred_region
      _
    $region25: #{attention_forward.3} parent=1 // pred_fallthru
      _
    // Predicated region
    $region26: #{attention_forward.3} parent=1 // pred_check
      _
    $region27: #{attention_forward.3} parent=1 // pred_check_branch
      %158 = sbr.rel (0) target = $region29
    $region28: #{attention_forward.3} parent=1 // pred_region
      _
    $region29: #{attention_forward.3} parent=1 // pred_fallthru
      _
    // Predicated region
    $region30: #{attention_forward.3} parent=1 // pred_check
      _
    $region31: #{attention_forward.3} parent=1 // pred_check_branch
      %160 = sbr.rel (0) target = $region33
    $region32: #{attention_forward.3} parent=1 // pred_region
      _
    $region33: #{attention_forward.3} parent=1 // pred_fallthru
      _
    // Predicated region
    $region34: #{attention_forward.3} parent=1 // pred_check
      _
    $region35: #{attention_forward.3} parent=1 // pred_check_branch
      %162 = sbr.rel (0) target = $region37
    $region36: #{attention_forward.3} parent=1 // pred_region
      _
    $region37: #{attention_forward.3} parent=1 // pred_fallthru
      _
    // Predicated region
    $region38: #{attention_forward.3} parent=1 // pred_check
      _
    $region39: #{attention_forward.3} parent=1 // pred_check_branch
      %164 = sbr.rel (0) target = $region41
    $region40: #{attention_forward.3} parent=1 // pred_region
      _
    $region41: #{attention_forward.3} parent=1 // pred_fallthru
      _
    %165 = vsyncpa [#allocation3], 1
    %166 = vsyncpa [#allocation5], 1

// kernel: attention_forward.5
$region0: #{attention_forward.5}
  #allocation0 [shape = 'u32[]', space=smem, size = 0x4, offset = 0x4, fixed_abs, tag = 'smem constant byte address 0x4 - core index']
  #allocation1 [shape = 'u32[144,128]{1,0:T(1,128)}', space=vmem, size = 0x12000, scoped, tag = 'internal scratch']
  %s0 = inlined_call_operand.vmem [shape: f32[16,64], index: 0, kind: input, shape index: {}]
  %s1 = inlined_call_operand.vmem [shape: f32[64,32], index: 1, kind: input, shape index: {}]
  %s2 = inlined_call_operand.vmem [shape: f32[1,32], index: 2, kind: input, shape index: {}]
  %s3 = inlined_call_operand.hbm [shape: f32[16,32], index: 3, kind: output, shape index: {}]
  %s4 = sld [smem:[#allocation0]]
  $region22: #{attention_forward.5} parent=0
    _
  %s6 = ssub.s32 1, %s4
  %s7 = scalar_select 0, %s6, %s4
  $region1: #{attention_forward.5} parent=0
    #allocation2 [shape = 'u8[8192]{0}', space=vmem, size = 0x2000, scoped, tag = 'output window, operand 0, single buffered']
    #allocation3 [shape = 's32[1]{0}', space=sflag, size = 0x4, scoped, tag = 'scoped memory for attention_forward.5']
    %8 = vsyncpa [#allocation3], 0
    // Predicated region
    $region2: #{attention_forward.5} parent=1 // pred_check
      _
    $region3: #{attention_forward.5} parent=1 // pred_check_branch
      %10 = sbr.rel (0) target = $region5
    $region4: #{attention_forward.5} parent=1 // pred_region
      _
    $region5: #{attention_forward.5} parent=1 // pred_fallthru
      _
    // Predicated region
    $region6: #{attention_forward.5} parent=1 // pred_check
      _
    $region7: #{attention_forward.5} parent=1 // pred_check_branch
      %12 = sbr.rel (0) target = $region9
    $region8: #{attention_forward.5} parent=1 // pred_region
      _
    $region9: #{attention_forward.5} parent=1 // pred_fallthru
      _
    // Predicated region
    $region10: #{attention_forward.5} parent=1 // pred_check
      _
    $region11: #{attention_forward.5} parent=1 // pred_check_branch
      %14 = sbr.rel (0) target = $region13
    $region12: #{attention_forward.5} parent=1 // pred_region
      _
    $region13: #{attention_forward.5} parent=1 // pred_fallthru
      _
    %v15 = vld [vmem:[%s0] sm:$0xff]
    %v16 = vld [vmem:[%s0 + $0x8] sm:$0xff]
    %v17 = vld [vmem:[%s1] sm:$0xff]
    %v18 = vld [vmem:[%s1 + $0x8] sm:$0xff]
    %v19 = vld [vmem:[%s1 + $0x10] sm:$0xff]
    %v20 = vld [vmem:[%s1 + $0x18] sm:$0xff]
    %v21 = vld [vmem:[%s1 + $0x20] sm:$0xff]
    %v22 = vld [vmem:[%s1 + $0x28] sm:$0xff]
    %v23 = vld [vmem:[%s1 + $0x30] sm:$0xff]
    %v24 = vld [vmem:[%s1 + $0x38] sm:$0xff]
    %v25 = vld [vmem:[%s2] sm:$0x1]
    %v27 = vlaneseq
    %v28 = vshrl.u32 %v27, 7
    %v29 = vsub.s32 0, %v28
    %v30 = vrot.slane %v25, %v29
    %vm32 = vcmask 523264
    %v34 = vsel %vm32, %v15, 0
    %v37 = vsel %vm32, %v16, 0
    %39 = vmatprep.subr.mxu0 0.0
    %40 = vmatpush1.msra.mxu0 %v17
    %41 = vmatprep.subr.mxu0 0.0
    %42 = vmatpush1.msra.mxu0 %v18
    %43 = vmatprep.subr.mxu0 0.0
    %44 = vmatpush1.msra.mxu0 %v19
    %45 = vmatprep.subr.mxu0 0.0
    %46 = vmatpush1.msra.mxu0 %v20
    %47 = vmatprep.subr.mxu0 0.0
    %48 = vmatpush1.msra.mxu0 %v21
    %49 = vmatprep.subr.mxu0 0.0
    %50 = vmatpush1.msra.mxu0 %v22
    %51 = vmatprep.subr.mxu0 0.0
    %52 = vmatpush1.msra.mxu0 %v23
    %53 = vmatprep.subr.mxu0 0.0
    %54 = vmatpush1.msra.mxu0 %v24
    %55 = vmatprep.subr.mxu0 0.0
    %56 = vmatpush1.msra.mxu0 0.0
    %57 = vmatprep.subr.mxu0 0.0
    %58 = vmatpush1.msra.mxu0 0.0
    %59 = vmatprep.subr.mxu0 0.0
    %60 = vmatpush1.msra.mxu0 0.0
    %61 = vmatprep.subr.mxu0 0.0
    %62 = vmatpush1.msra.mxu0 0.0
    %63 = vmatprep.subr.mxu0 0.0
    %64 = vmatpush1.msra.mxu0 0.0
    %65 = vmatprep.subr.mxu0 0.0
    %66 = vmatpush1.msra.mxu0 0.0
    %67 = vmatprep.subr.mxu0 0.0
    %68 = vmatpush1.msra.mxu0 0.0
    %69 = vmatprep.subr.mxu0 0.0
    %70 = vmatpush1.msra.mxu0 0.0
    %71 = vmatprep.subr.mxu0 0.0
    %72 = vmatpush1.msra.mxu0 0.0
    %73 = vmatprep.subr.mxu0 0.0
    %74 = vmatpush1.msra.mxu0 0.0
    %75 = vmatprep.subr.mxu0 0.0
    %76 = vmatpush1.msra.mxu0 0.0
    %77 = vmatprep.subr.mxu0 0.0
    %78 = vmatpush1.msra.mxu0 0.0
    %79 = vmatprep.subr.mxu0 0.0
    %80 = vmatpush1.msra.mxu0 0.0
    %81 = vmatprep.subr.mxu0 0.0
    %82 = vmatpush1.msra.mxu0 0.0
    %83 = vmatprep.subr.mxu0 0.0
    %84 = vmatpush1.msra.mxu0 0.0
    %85 = vmatprep.subr.mxu0 0.0
    %86 = vmatpush1.msra.mxu0 0.0
    %87 = vmatprep.subr.mxu0 0.0
    %88 = vmatpush1.msra.mxu0 0.0
    %89 = vmatprep.subr.mxu0 0.0
    %90 = vmatpush1.msra.mxu0 0.0
    %91 = vmatprep.subr.mxu0 0.0
    %92 = vmatpush1.msra.mxu0 0.0
    %93 = vmatprep.subr.mxu0 0.0
    %94 = vmatpush1.msra.mxu0 0.0
    %95 = vmatprep.subr.mxu0 0.0
    %96 = vmatpush1.msra.mxu0 0.0
    %97 = vmatprep.subr.mxu0 0.0
    %98 = vmatpush1.msra.mxu0 0.0
    %99 = vmatprep.subr.mxu0 0.0
    %100 = vmatpush1.msra.mxu0 0.0
    %101 = vmatprep.subr.mxu0 0.0
    %102 = vmatpush1.msra.mxu0 0.0
    %103 = vmatprep.mubr.f32.mxu0 0.0
    %104 = vmatmul.mubr.f32.gmra.mrb[0].mxu0 %v34
    %v105 = vpop.f32.mrb[0].mxu0
    %v106 = vadd.f32 %v30, %v105
    %v107 = vpop.f32.mrb[0].mxu0
    %108 = vmatprep.mubr.f32.mxu0 0.0
    %109 = vmatmul.mubr.f32.gmra.mrb[0].mxu0 %v37
    %v110 = vpop.f32.mrb[0].mxu0
    %v111 = vadd.f32 %v30, %v110
    %v112 = vpop.f32.mrb[0].mxu0
    %113 = vdwg.mxu0
    %vm114 = vcmask 261120
    %115 = vst.msk [vmem:[#allocation2] sm:$0xff] %vm114, %v106
    %116 = vst.msk [vmem:[#allocation2 + $0x8] sm:$0xff] %vm114, %v111
    // Predicated region
    $region14: #{attention_forward.5} parent=1 // pred_check
      _
    $region15: #{attention_forward.5} parent=1 // pred_check_branch
      %118 = sbr.rel (0) target = $region17
    $region16: #{attention_forward.5} parent=1 // pred_region
      %s120 = ssub.s32 256, 256
      %121 = vsyncadd [#allocation3], %s120
      %s122 = sshll.u32 [#allocation2], 4
      %s123 = int_to_ptr.vmem [resolvable:$true] %s122
      %128 = dma.vmem_to_hbm [thread:$0]  %s123, 256, %s3, [#allocation3], 128, 128, 8
    $region17: #{attention_forward.5} parent=1 // pred_fallthru
      _
    // Predicated region
    $region18: #{attention_forward.5} parent=1 // pred_check
      _
    $region19: #{attention_forward.5} parent=1 // pred_check_branch
      %130 = sbr.rel (0) target = $region21
    $region20: #{attention_forward.5} parent=1 // pred_region
      %131 = dma.done [#allocation3], 256
    $region21: #{attention_forward.5} parent=1 // pred_fallthru
      _
    %132 = vsyncpa [#allocation3], 1

// kernel: attention_forward.4
$region0: #{attention_forward.4}
  #allocation0 [shape = 'u32[]', space=smem, size = 0x4, offset = 0x4, fixed_abs, tag = 'smem constant byte address 0x4 - core index']
  #allocation1 [shape = 'u32[144,128]{1,0:T(1,128)}', space=vmem, size = 0x12000, scoped, tag = 'internal scratch']
  #allocation2 [shape = 'f32[4,8,1]{2,1,0:T(8,128)}', space=vmem, size = 0x4000, scoped, tag = 'scratch operand']
  #allocation3 [shape = 'f32[4,8,1]{2,1,0:T(8,128)}', space=vmem, size = 0x4000, scoped, tag = 'scratch operand']
  #allocation4 [shape = 'f32[4,8,16]{2,1,0:T(8,128)}', space=vmem, size = 0x4000, scoped, tag = 'scratch operand']
  %s0 = inlined_call_operand.vmem [shape: f32[2,8,64], index: 0, kind: input, shape index: {}]
  %s1 = inlined_call_operand.vmem [shape: f32[2,8,64], index: 1, kind: input, shape index: {}]
  %s2 = inlined_call_operand.vmem [shape: f32[2,8,64], index: 2, kind: input, shape index: {}]
  %s3 = inlined_call_operand.vmem [shape: f32[2,8,64], index: 3, kind: output, shape index: {}]
  %s4 = sld [smem:[#allocation0]]
  $region53: #{attention_forward.4} parent=0
    _
  %s6 = ssub.s32 1, %s4
  %s7 = scalar_select 0, %s6, %s4
  loop: start=0, step=1, limit=4
  $region2: #{attention_forward.4} parent=0 // loop_pre_header
    _
  $region3: #{attention_forward.4} parent=0 // loop_header
    %s9 = sphi 0, %s13
    %p10 = scmp.ge.s32.totalorder %s9, 4
    %s16 = sphi 0, %s35
    %s17 = sphi 0, %s31
    %s18 = sphi 0, %s27
    %s19 = sphi 0, %s16
    %s20 = sphi 0, %s17
    %s21 = sphi 0, %s18
    %s22 = sphi 0, %s19
    %s23 = sphi 0, %s20
    %s24 = sphi 0, %s21
    %s40 = sphi 0, %s42
    %s43 = sphi 0, %s40
    %s44 = sphi 0, %s43
    %s60 = sphi 0, %s44
    %s68 = sphi 0, %s70
    %s71 = sphi 0, %s68
    %s72 = sphi 0, %s71
    %s88 = sphi 0, %s72
    %s96 = sphi 0, %s98
    %s99 = sphi 0, %s96
    %s100 = sphi 0, %s99
    %s116 = sphi 0, %s100
    %s124 = sphi 0, %s126
    %s127 = sphi 0, %s124
    %s128 = sphi 0, %s127
    %s144 = sphi 0, %s128
  $region4: #{attention_forward.4} parent=0 // loop_header_branch
    %12 = sbr.rel (%p10) target = $region8
  $region5: #{attention_forward.4} parent=0 // loop_body
    %s14 = ssub.s32 %s9, 1
    %s15 = ssub.s32 %s9, 2
    %s25 = sadd.s32 1, %s18
    %p26 = scmp.ge.s32.totalorder %s25, 1
    %s27 = scalar_select %p26, 0, %s25
    %s28 = sadd.s32 1, %s17
    %s29 = scalar_select %p26, %s28, %s17
    %p30 = scmp.ge.s32.totalorder %s29, 1
    %s31 = scalar_select %p30, 0, %s29
    %s32 = sadd.s32 1, %s16
    %s33 = scalar_select %p30, %s32, %s16
    %p34 = scmp.ge.s32.totalorder %s33, 2
    %s35 = scalar_select %p34, 0, %s33
    %s36 = ssub.s32 %s16, %s35
    %s37 = ssub.s32 %s17, %s31
    %s38 = sor.u32 %s36, %s37
    %p39 = scmp.eq.s32.totalorder %s38, 0
    %s41 = sadd.s32 %s40, 1
    %s42 = scalar_select %p39, %s40, %s41
    %p45 = pneg %p39
    %p46 = scmp.eq.s32.totalorder %s9, 1
    %p47 = por %p45, %p46
    %p48 = scmp.ne.s32.totalorder %s40, %s43
    %p49 = scmp.eq.s32.totalorder %s9, 0
    %p50 = por %p48, %p49
    %p51 = scmp.ne.s32.totalorder %s40, %s43
    %p52 = scmp.eq.s32.totalorder %s14, 1
    %p53 = por %p51, %p52
    %p54 = scmp.ne.s32.totalorder %s43, %s44
    %p55 = scmp.eq.s32.totalorder %s14, 0
    %p56 = por %p54, %p55
    %p57 = scmp.ne.s32.totalorder %s43, %s44
    %p58 = scmp.eq.s32.totalorder %s15, 1
    %p59 = por %p57, %p58
    %p61 = scmp.ne.s32.totalorder %s44, %s60
    %p62 = scmp.eq.s32.totalorder %s15, 0
    %p63 = por %p61, %p62
    %s64 = ssub.s32 %s16, %s35
    %s65 = ssub.s32 %s18, %s27
    %s66 = sor.u32 %s64, %s65
    %p67 = scmp.eq.s32.totalorder %s66, 0
    %s69 = sadd.s32 %s68, 1
    %s70 = scalar_select %p67, %s68, %s69
    %p73 = pneg %p67
    %p74 = scmp.eq.s32.totalorder %s9, 1
    %p75 = por %p73, %p74
    %p76 = scmp.ne.s32.totalorder %s68, %s71
    %p77 = scmp.eq.s32.totalorder %s9, 0
    %p78 = por %p76, %p77
    %p79 = scmp.ne.s32.totalorder %s68, %s71
    %p80 = scmp.eq.s32.totalorder %s14, 1
    %p81 = por %p79, %p80
    %p82 = scmp.ne.s32.totalorder %s71, %s72
    %p83 = scmp.eq.s32.totalorder %s14, 0
    %p84 = por %p82, %p83
    %p85 = scmp.ne.s32.totalorder %s71, %s72
    %p86 = scmp.eq.s32.totalorder %s15, 1
    %p87 = por %p85, %p86
    %p89 = scmp.ne.s32.totalorder %s72, %s88
    %p90 = scmp.eq.s32.totalorder %s15, 0
    %p91 = por %p89, %p90
    %s92 = ssub.s32 %s16, %s35
    %s93 = ssub.s32 %s18, %s27
    %s94 = sor.u32 %s92, %s93
    %p95 = scmp.eq.s32.totalorder %s94, 0
    %s97 = sadd.s32 %s96, 1
    %s98 = scalar_select %p95, %s96, %s97
    %p101 = pneg %p95
    %p102 = scmp.eq.s32.totalorder %s9, 1
    %p103 = por %p101, %p102
    %p104 = scmp.ne.s32.totalorder %s96, %s99
    %p105 = scmp.eq.s32.totalorder %s9, 0
    %p106 = por %p104, %p105
    %p107 = scmp.ne.s32.totalorder %s96, %s99
    %p108 = scmp.eq.s32.totalorder %s14, 1
    %p109 = por %p107, %p108
    %p110 = scmp.ne.s32.totalorder %s99, %s100
    %p111 = scmp.eq.s32.totalorder %s14, 0
    %p112 = por %p110, %p111
    %p113 = scmp.ne.s32.totalorder %s99, %s100
    %p114 = scmp.eq.s32.totalorder %s15, 1
    %p115 = por %p113, %p114
    %p117 = scmp.ne.s32.totalorder %s100, %s116
    %p118 = scmp.eq.s32.totalorder %s15, 0
    %p119 = por %p117, %p118
    %s120 = ssub.s32 %s16, %s35
    %s121 = ssub.s32 %s17, %s31
    %s122 = sor.u32 %s120, %s121
    %p123 = scmp.eq.s32.totalorder %s122, 0
    %s125 = sadd.s32 %s124, 1
    %s126 = scalar_select %p123, %s124, %s125
    %p129 = pneg %p123
    %p130 = scmp.eq.s32.totalorder %s9, 1
    %p131 = por %p129, %p130
    %p132 = scmp.ne.s32.totalorder %s124, %s127
    %p133 = scmp.eq.s32.totalorder %s9, 0
    %p134 = por %p132, %p133
    %p135 = scmp.ne.s32.totalorder %s124, %s127
    %p136 = scmp.eq.s32.totalorder %s14, 1
    %p137 = por %p135, %p136
    %p138 = scmp.ne.s32.totalorder %s127, %s128
    %p139 = scmp.eq.s32.totalorder %s14, 0
    %p140 = por %p138, %p139
    %p141 = scmp.ne.s32.totalorder %s127, %s128
    %p142 = scmp.eq.s32.totalorder %s15, 1
    %p143 = por %p141, %p142
    %p145 = scmp.ne.s32.totalorder %s128, %s144
    %p146 = scmp.eq.s32.totalorder %s15, 0
    %p147 = por %p145, %p146
    %p148 = scmp.le.s32.totalorder 1, %s9
    %p149 = scmp.lt.s32.totalorder %s9, 3
    %p150 = pnand %p148, %p149
    %p151 = pneg %p150
    // Predicated region
    $region9: #{attention_forward.4} parent=5 // pred_check
      _
    $region10: #{attention_forward.4} parent=5 // pred_check_branch
      %153 = sbr.rel (%p150) target = $region12
    $region11: #{attention_forward.4} parent=5 // pred_region
      %s154 = ssub.s32 %s9, 1
    $region12: #{attention_forward.4} parent=5 // pred_fallthru
      _
    %p155 = scmp.lt.s32.totalorder %s9, 2
    // Predicated region
    $region13: #{attention_forward.4} parent=5 // pred_check
      %p156 = pneg %p155
    $region14: #{attention_forward.4} parent=5 // pred_check_branch
      %158 = sbr.rel (%p156) target = $region16
    $region15: #{attention_forward.4} parent=5 // pred_region
      // Predicated region
      $region17: #{attention_forward.4} parent=15 // pred_check
        %p159 = pneg %p50
      $region18: #{attention_forward.4} parent=15 // pred_check_branch
        %161 = sbr.rel (%p159) target = $region20
      $region19: #{attention_forward.4} parent=15 // pred_region
        %p162 = scmp.lt.s32.totalorder %s16, 1
        %s163 = scalar_select %p162, %s16, 1
        %p164 = scmp.lt.s32.totalorder %s17, 0
        %s165 = scalar_select %p164, %s17, 0
        %s166 = sadd.s32 %s165, %s163
        %s167 = smul.addr %s166, 8
        %s168 = scalar_lea.vmem %s0, %s167
      $region20: #{attention_forward.4} parent=15 // pred_fallthru
        _
      // Predicated region
      $region21: #{attention_forward.4} parent=15 // pred_check
        %p169 = pneg %p78
      $region22: #{attention_forward.4} parent=15 // pred_check_branch
        %171 = sbr.rel (%p169) target = $region24
      $region23: #{attention_forward.4} parent=15 // pred_region
        %p172 = scmp.lt.s32.totalorder %s16, 1
        %s173 = scalar_select %p172, %s16, 1
        %p174 = scmp.lt.s32.totalorder %s18, 0
        %s175 = scalar_select %p174, %s18, 0
        %s176 = sadd.s32 %s175, %s173
        %s177 = smul.addr %s176, 8
        %s178 = scalar_lea.vmem %s1, %s177
      $region24: #{attention_forward.4} parent=15 // pred_fallthru
        _
      // Predicated region
      $region25: #{attention_forward.4} parent=15 // pred_check
        %p179 = pneg %p106
      $region26: #{attention_forward.4} parent=15 // pred_check_branch
        %181 = sbr.rel (%p179) target = $region28
      $region27: #{attention_forward.4} parent=15 // pred_region
        %p182 = scmp.lt.s32.totalorder %s16, 1
        %s183 = scalar_select %p182, %s16, 1
        %p184 = scmp.lt.s32.totalorder %s18, 0
        %s185 = scalar_select %p184, %s18, 0
        %s186 = sadd.s32 %s185, %s183
        %s187 = smul.addr %s186, 8
        %s188 = scalar_lea.vmem %s2, %s187
      $region28: #{attention_forward.4} parent=15 // pred_fallthru
        _
    $region16: #{attention_forward.4} parent=5 // pred_fallthru
      _
    %p189 = scmp.le.s32.totalorder 1, %s9
    %p190 = scmp.lt.s32.totalorder %s9, 3
    %p191 = pnand %p189, %p190
    %p192 = pneg %p191
    // Predicated region
    $region29: #{attention_forward.4} parent=5 // pred_check
      _
    $region30: #{attention_forward.4} parent=5 // pred_check_branch
      %194 = sbr.rel (%p191) target = $region32
    $region31: #{attention_forward.4} parent=5 // pred_region
      %s195 = ssub.s32 %s9, 1
      %p196 = scmp.lt.s32.totalorder %s19, 1
      %s197 = scalar_select %p196, %s19, 1
      %p198 = scmp.lt.s32.totalorder %s20, 0
      %s199 = scalar_select %p198, %s20, 0
      %s200 = sadd.s32 %s199, %s197
      %s201 = smul.addr %s200, 8
      %s202 = scalar_lea.vmem %s0, %s201
      %p203 = pneg %p56
      %p204 = pneg %p53
      %p205 = scmp.lt.s32.totalorder %s19, 1
      %s206 = scalar_select %p205, %s19, 1
      %p207 = scmp.lt.s32.totalorder %s21, 0
      %s208 = scalar_select %p207, %s21, 0
      %s209 = sadd.s32 %s208, %s206
      %s210 = smul.addr %s209, 8
      %s211 = scalar_lea.vmem %s1, %s210
      %p212 = pneg %p84
      %p213 = pneg %p81
      %p214 = scmp.lt.s32.totalorder %s19, 1
      %s215 = scalar_select %p214, %s19, 1
      %p216 = scmp.lt.s32.totalorder %s21, 0
      %s217 = scalar_select %p216, %s21, 0
      %s218 = sadd.s32 %s217, %s215
      %s219 = smul.addr %s218, 8
      %s220 = scalar_lea.vmem %s2, %s219
      %p221 = pneg %p112
      %p222 = pneg %p109
      %p223 = pneg %p140
      %p224 = pneg %p137
      %p225 = scmp.lt.s32.totalorder %s19, 1
      %s226 = scalar_select %p225, %s19, 1
      %p227 = scmp.lt.s32.totalorder %s20, 0
      %s228 = scalar_select %p227, %s20, 0
      %s229 = sadd.s32 %s228, %s226
      %s230 = smul.addr %s229, 8
      %s231 = scalar_lea.vmem %s3, %s230
      %p232 = scmp.lt.s32.totalorder %s19, 1
      %s233 = scalar_select %p232, %s19, 1
      %p234 = scmp.lt.s32.totalorder %s20, 0
      %s235 = scalar_select %p234, %s20, 0
      %s236 = sadd.s32 %s235, %s233
      %s237 = smul.addr %s236, 8
      %s238 = scalar_lea.vmem %s0, %s237
      %p239 = scmp.lt.s32.totalorder %s19, 1
      %s240 = scalar_select %p239, %s19, 1
      %p241 = scmp.lt.s32.totalorder %s21, 0
      %s242 = scalar_select %p241, %s21, 0
      %s243 = sadd.s32 %s242, %s240
      %s244 = smul.addr %s243, 8
      %s245 = scalar_lea.vmem %s1, %s244
      %p246 = scmp.lt.s32.totalorder %s19, 1
      %s247 = scalar_select %p246, %s19, 1
      %p248 = scmp.lt.s32.totalorder %s21, 0
      %s249 = scalar_select %p248, %s21, 0
      %s250 = sadd.s32 %s249, %s247
      %s251 = smul.addr %s250, 8
      %s252 = scalar_lea.vmem %s2, %s251
      %p253 = scmp.lt.s32.totalorder %s19, 1
      %s254 = scalar_select %p253, %s19, 1
      %p255 = scmp.lt.s32.totalorder %s20, 0
      %s256 = scalar_select %p255, %s20, 0
      %s257 = sadd.s32 %s256, %s254
      %s258 = smul.addr %s257, 8
      %s259 = scalar_lea.vmem %s3, %s258
      %p260 = scmp.eq.s32.totalorder %s21, 0
      // Predicated region
      $region33: #{attention_forward.4} parent=31 // pred_check
        %p261 = pneg %p260
      $region34: #{attention_forward.4} parent=31 // pred_check_branch
        %263 = sbr.rel (%p261) target = $region36
      $region35: #{attention_forward.4} parent=31 // pred_region
        %vm264 = vcmask 7168
        %265 = vst.msk [vmem:[#allocation2] sm:$0xff] %vm264, -inf
        %266 = vst.msk [vmem:[#allocation2 + $0x8] sm:$0xff] %vm264, -inf
        %267 = vst.msk [vmem:[#allocation2 + $0x10] sm:$0xff] %vm264, -inf
        %268 = vst.msk [vmem:[#allocation2 + $0x18] sm:$0xff] %vm264, -inf
        %269 = vst.msk [vmem:[#allocation3] sm:$0xff] %vm264, 0.0
        %270 = vst.msk [vmem:[#allocation3 + $0x8] sm:$0xff] %vm264, 0.0
        %271 = vst.msk [vmem:[#allocation3 + $0x10] sm:$0xff] %vm264, 0.0
        %272 = vst.msk [vmem:[#allocation3 + $0x18] sm:$0xff] %vm264, 0.0
        %vm273 = vcmask 130048
        %274 = vst.msk [vmem:[#allocation4] sm:$0xff] %vm273, 0.0
        %275 = vst.msk [vmem:[#allocation4 + $0x8] sm:$0xff] %vm273, 0.0
        %276 = vst.msk [vmem:[#allocation4 + $0x10] sm:$0xff] %vm273, 0.0
        %277 = vst.msk [vmem:[#allocation4 + $0x18] sm:$0xff] %vm273, 0.0
      $region36: #{attention_forward.4} parent=31 // pred_fallthru
        _
      %v278 = vld [vmem:[%s238] sm:$0xff]
      %v279 = vld [vmem:[%s245] sm:$0xff]
      %v280 = vld [vmem:[%s252] sm:$0xff]
      %vm281 = vcmask 130048
      %v283 = vsel %vm281, %v278, 0
      %v286 = vsel %vm281, %v279, 0
      %288 = vmatprep.subr.mxu0 0.0
      %289 = vmatpush1.xpose.msra.mxu0 %v286
      %290 = vmatprep.subr.mxu0 0.0
      %291 = vmatpush1.xpose.msra.mxu0 0.0
      %292 = vmatprep.subr.mxu0 0.0
      %293 = vmatpush1.xpose.msra.mxu0 0.0
      %294 = vmatprep.subr.mxu0 0.0
      %295 = vmatpush1.xpose.msra.mxu0 0.0
      %296 = vmatprep.subr.mxu0 0.0
      %297 = vmatpush1.xpose.msra.mxu0 0.0
      %298 = vmatprep.subr.mxu0 0.0
      %299 = vmatpush1.xpose.msra.mxu0 0.0
      %300 = vmatprep.subr.mxu0 0.0
      %301 = vmatpush1.xpose.msra.mxu0 0.0
      %302 = vmatprep.subr.mxu0 0.0
      %303 = vmatpush1.xpose.msra.mxu0 0.0
      %304 = vmatprep.subr.mxu0 0.0
      %305 = vmatpush1.xpose.msra.mxu0 0.0
      %306 = vmatprep.subr.mxu0 0.0
      %307 = vmatpush1.xpose.msra.mxu0 0.0
      %308 = vmatprep.subr.mxu0 0.0
      %309 = vmatpush1.xpose.msra.mxu0 0.0
      %310 = vmatprep.subr.mxu0 0.0
      %311 = vmatpush1.xpose.msra.mxu0 0.0
      %312 = vmatprep.subr.mxu0 0.0
      %313 = vmatpush1.xpose.msra.mxu0 0.0
      %314 = vmatprep.subr.mxu0 0.0
      %315 = vmatpush1.xpose.msra.mxu0 0.0
      %316 = vmatprep.subr.mxu0 0.0
      %317 = vmatpush1.xpose.msra.mxu0 0.0
      %318 = vmatprep.subr.mxu0 0.0
      %319 = vmatpush1.xpose.msra.mxu0 0.0
      %320 = vmatprep.subr.mxu0 0.0
      %321 = vmatpush1.xpose.msra.mxu0 0.0
      %322 = vmatprep.subr.mxu0 0.0
      %323 = vmatpush1.xpose.msra.mxu0 0.0
      %324 = vmatprep.subr.mxu0 0.0
      %325 = vmatpush1.xpose.msra.mxu0 0.0
      %326 = vmatprep.subr.mxu0 0.0
      %327 = vmatpush1.xpose.msra.mxu0 0.0
      %328 = vmatprep.subr.mxu0 0.0
      %329 = vmatpush1.xpose.msra.mxu0 0.0
      %330 = vmatprep.subr.mxu0 0.0
      %331 = vmatpush1.xpose.msra.mxu0 0.0
      %332 = vmatprep.subr.mxu0 0.0
      %333 = vmatpush1.xpose.msra.mxu0 0.0
      %334 = vmatprep.subr.mxu0 0.0
      %335 = vmatpush1.xpose.msra.mxu0 0.0
      %336 = vmatprep.subr.mxu0 0.0
      %337 = vmatpush1.xpose.msra.mxu0 0.0
      %338 = vmatprep.subr.mxu0 0.0
      %339 = vmatpush1.xpose.msra.mxu0 0.0
      %340 = vmatprep.subr.mxu0 0.0
      %341 = vmatpush1.xpose.msra.mxu0 0.0
      %342 = vmatprep.subr.mxu0 0.0
      %343 = vmatpush1.xpose.msra.mxu0 0.0
      %344 = vmatprep.subr.mxu0 0.0
      %345 = vmatpush1.xpose.msra.mxu0 0.0
      %346 = vmatprep.subr.mxu0 0.0
      %347 = vmatpush1.xpose.msra.mxu0 0.0
      %348 = vmatprep.subr.mxu0 0.0
      %349 = vmatpush1.xpose.msra.mxu0 0.0
      %350 = vmatprep.subr.mxu0 0.0
      %351 = vmatpush1.xpose.msra.mxu0 0.0
      %352 = vmatprep.mubr.f32.mxu0 0.0
      %353 = vmatmul.mubr.f32.gmra.mrb[0].mxu0 %v283
      %v354 = vpop.f32.mrb[0].mxu0
      %v355 = vadd.f32 0.0, %v354
      %v356 = vpop.f32.mrb[0].mxu0
      %357 = vdwg.mxu0
      %v358 = vld [vmem:[#allocation2] sm:$0xff]
      %vm359 = vcmask 64512
      %v360 = vsel %vm359, %v355, -inf
      %361 = vmax.xlane.f32.xlu0 %v360
      %v362 = vpop.xlane.xlu0 %361
      %v363 = vmax.f32 %v358, %v362
      %v364 = vsub.f32 %v358, %v363
      %v365 = vmul.f32 %v364, 1.442695
      %v366 = vpow.pop %v365
      %368 = vset.pattern.permute.xlu0 0
      %369 = vperm.xlu0 %368, %v363
      %v370 = vpop.permute.xlu0 %369
      %v372 = vsub.f32 %v355, %v370
      %v373 = vmul.f32 %v372, 1.442695
      %v374 = vpow.pop %v373
      %v375 = vld [vmem:[#allocation3] sm:$0xff]
      %v376 = vmul.f32 %v366, %v375
      %v377 = vsel %vm359, %v374, 0.0
      %378 = vadd.xlane.f32.xlu0 %v377
      %v379 = vpop.xlane.xlu0 %378
      %v380 = vadd.f32 %v376, %v379
      %vm381 = vcmask 7168
      %382 = vst.msk [vmem:[#allocation3] sm:$0xff] %vm381, %v380
      %v383 = vld [vmem:[#allocation4] sm:$0xff]
      %385 = vset.pattern.permute.xlu0 0
      %386 = vperm.xlu0 %385, %v366
      %v387 = vpop.permute.xlu0 %386
      %v389 = vmul.f32 %v387, %v383
      %v391 = vsel %vm359, %v374, 0
      %393 = vmatprep.subr.mxu0 0.0
      %394 = vmatpush1.msra.mxu0 %v280
      %395 = vmatprep.subr.mxu0 0.0
      %396 = vmatpush1.msra.mxu0 0.0
      %397 = vmatprep.subr.mxu0 0.0
      %398 = vmatpush1.msra.mxu0 0.0
      %399 = vmatprep.subr.mxu0 0.0
      %400 = vmatpush1.msra.mxu0 0.0
      %401 = vmatprep.subr.mxu0 0.0
      %402 = vmatpush1.msra.mxu0 0.0
      %403 = vmatprep.subr.mxu0 0.0
      %404 = vmatpush1.msra.mxu0 0.0
      %405 = vmatprep.subr.mxu0 0.0
      %406 = vmatpush1.msra.mxu0 0.0
      %407 = vmatprep.subr.mxu0 0.0
      %408 = vmatpush1.msra.mxu0 0.0
      %409 = vmatprep.subr.mxu0 0.0
      %410 = vmatpush1.msra.mxu0 0.0
      %411 = vmatprep.subr.mxu0 0.0
      %412 = vmatpush1.msra.mxu0 0.0
      %413 = vmatprep.subr.mxu0 0.0
      %414 = vmatpush1.msra.mxu0 0.0
      %415 = vmatprep.subr.mxu0 0.0
      %416 = vmatpush1.msra.mxu0 0.0
      %417 = vmatprep.subr.mxu0 0.0
      %418 = vmatpush1.msra.mxu0 0.0
      %419 = vmatprep.subr.mxu0 0.0
      %420 = vmatpush1.msra.mxu0 0.0
      %421 = vmatprep.subr.mxu0 0.0
      %422 = vmatpush1.msra.mxu0 0.0
      %423 = vmatprep.subr.mxu0 0.0
      %424 = vmatpush1.msra.mxu0 0.0
      %425 = vmatprep.subr.mxu0 0.0
      %426 = vmatpush1.msra.mxu0 0.0
      %427 = vmatprep.subr.mxu0 0.0
      %428 = vmatpush1.msra.mxu0 0.0
      %429 = vmatprep.subr.mxu0 0.0
      %430 = vmatpush1.msra.mxu0 0.0
      %431 = vmatprep.subr.mxu0 0.0
      %432 = vmatpush1.msra.mxu0 0.0
      %433 = vmatprep.subr.mxu0 0.0
      %434 = vmatpush1.msra.mxu0 0.0
      %435 = vmatprep.subr.mxu0 0.0
      %436 = vmatpush1.msra.mxu0 0.0
      %437 = vmatprep.subr.mxu0 0.0
      %438 = vmatpush1.msra.mxu0 0.0
      %439 = vmatprep.subr.mxu0 0.0
      %440 = vmatpush1.msra.mxu0 0.0
      %441 = vmatprep.subr.mxu0 0.0
      %442 = vmatpush1.msra.mxu0 0.0
      %443 = vmatprep.subr.mxu0 0.0
      %444 = vmatpush1.msra.mxu0 0.0
      %445 = vmatprep.subr.mxu0 0.0
      %446 = vmatpush1.msra.mxu0 0.0
      %447 = vmatprep.subr.mxu0 0.0
      %448 = vmatpush1.msra.mxu0 0.0
      %449 = vmatprep.subr.mxu0 0.0
      %450 = vmatpush1.msra.mxu0 0.0
      %451 = vmatprep.subr.mxu0 0.0
      %452 = vmatpush1.msra.mxu0 0.0
      %453 = vmatprep.subr.mxu0 0.0
      %454 = vmatpush1.msra.mxu0 0.0
      %455 = vmatprep.subr.mxu0 0.0
      %456 = vmatpush1.msra.mxu0 0.0
      %457 = vmatprep.mubr.f32.mxu0 0.0
      %458 = vmatmul.mubr.f32.gmra.mrb[0].mxu0 %v391
      %v459 = vpop.f32.mrb[0].mxu0
      %v460 = vadd.f32 0.0, %v459
      %v461 = vpop.f32.mrb[0].mxu0
      %462 = vdwg.mxu0
      %v463 = vadd.f32 %v389, %v460
      %464 = vst.msk [vmem:[#allocation4] sm:$0xff] %vm281, %v463
      %465 = vst.msk [vmem:[#allocation2] sm:$0xff] %vm381, %v363
      %466 = vrot.lane.b32.xlu0 %v278, 112
      %v467 = vpop.permute.xlu0 %466
      %468 = vrot.lane.b32.xlu0 %v279, 112
      %v469 = vpop.permute.xlu0 %468
      %v470 = vsel %vm281, %v467, 0
      %v472 = vsel %vm281, %v469, 0
      %474 = vmatprep.subr.mxu0 0.0
      %475 = vmatpush1.xpose.msra.mxu0 %v472
      %476 = vmatprep.subr.mxu0 0.0
      %477 = vmatpush1.xpose.msra.mxu0 0.0
      %478 = vmatprep.subr.mxu0 0.0
      %479 = vmatpush1.xpose.msra.mxu0 0.0
      %480 = vmatprep.subr.mxu0 0.0
      %481 = vmatpush1.xpose.msra.mxu0 0.0
      %482 = vmatprep.subr.mxu0 0.0
      %483 = vmatpush1.xpose.msra.mxu0 0.0
      %484 = vmatprep.subr.mxu0 0.0
      %485 = vmatpush1.xpose.msra.mxu0 0.0
      %486 = vmatprep.subr.mxu0 0.0
      %487 = vmatpush1.xpose.msra.mxu0 0.0
      %488 = vmatprep.subr.mxu0 0.0
      %489 = vmatpush1.xpose.msra.mxu0 0.0
      %490 = vmatprep.subr.mxu0 0.0
      %491 = vmatpush1.xpose.msra.mxu0 0.0
      %492 = vmatprep.subr.mxu0 0.0
      %493 = vmatpush1.xpose.msra.mxu0 0.0
      %494 = vmatprep.subr.mxu0 0.0
      %495 = vmatpush1.xpose.msra.mxu0 0.0
      %496 = vmatprep.subr.mxu0 0.0
      %497 = vmatpush1.xpose.msra.mxu0 0.0
      %498 = vmatprep.subr.mxu0 0.0
      %499 = vmatpush1.xpose.msra.mxu0 0.0
      %500 = vmatprep.subr.mxu0 0.0
      %501 = vmatpush1.xpose.msra.mxu0 0.0
      %502 = vmatprep.subr.mxu0 0.0
      %503 = vmatpush1.xpose.msra.mxu0 0.0
      %504 = vmatprep.subr.mxu0 0.0
      %505 = vmatpush1.xpose.msra.mxu0 0.0
      %506 = vmatprep.subr.mxu0 0.0
      %507 = vmatpush1.xpose.msra.mxu0 0.0
      %508 = vmatprep.subr.mxu0 0.0
      %509 = vmatpush1.xpose.msra.mxu0 0.0
      %510 = vmatprep.subr.mxu0 0.0
      %511 = vmatpush1.xpose.msra.mxu0 0.0
      %512 = vmatprep.subr.mxu0 0.0
      %513 = vmatpush1.xpose.msra.mxu0 0.0
      %514 = vmatprep.subr.mxu0 0.0
      %515 = vmatpush1.xpose.msra.mxu0 0.0
      %516 = vmatprep.subr.mxu0 0.0
      %517 = vmatpush1.xpose.msra.mxu0 0.0
      %518 = vmatprep.subr.mxu0 0.0
      %519 = vmatpush1.xpose.msra.mxu0 0.0
      %520 = vmatprep.subr.mxu0 0.0
      %521 = vmatpush1.xpose.msra.mxu0 0.0
      %522 = vmatprep.subr.mxu0 0.0
      %523 = vmatpush1.xpose.msra.mxu0 0.0
      %524 = vmatprep.subr.mxu0 0.0
      %525 = vmatpush1.xpose.msra.mxu0 0.0
      %526 = vmatprep.subr.mxu0 0.0
      %527 = vmatpush1.xpose.msra.mxu0 0.0
      %528 = vmatprep.subr.mxu0 0.0
      %529 = vmatpush1.xpose.msra.mxu0 0.0
      %530 = vmatprep.subr.mxu0 0.0
      %531 = vmatpush1.xpose.msra.mxu0 0.0
      %532 = vmatprep.subr.mxu0 0.0
      %533 = vmatpush1.xpose.msra.mxu0 0.0
      %534 = vmatprep.subr.mxu0 0.0
      %535 = vmatpush1.xpose.msra.mxu0 0.0
      %536 = vmatprep.subr.mxu0 0.0
      %537 = vmatpush1.xpose.msra.mxu0 0.0
      %538 = vmatprep.mubr.f32.mxu0 0.0
      %539 = vmatmul.mubr.f32.gmra.mrb[0].mxu0 %v470
      %v540 = vpop.f32.mrb[0].mxu0
      %v541 = vadd.f32 0.0, %v540
      %v542 = vpop.f32.mrb[0].mxu0
      %543 = vdwg.mxu0
      %s544 = scalar_lea.vmem [#allocation2], 8
      %v545 = vld [vmem:[%s544] sm:$0xff]
      %v546 = vsel %vm359, %v541, -inf
      %547 = vmax.xlane.f32.xlu0 %v546
      %v548 = vpop.xlane.xlu0 %547
      %v549 = vmax.f32 %v545, %v548
      %v550 = vsub.f32 %v545, %v549
      %v551 = vmul.f32 %v550, 1.442695
      %v552 = vpow.pop %v551
      %554 = vset.pattern.permute.xlu0 0
      %555 = vperm.xlu0 %554, %v549
      %v556 = vpop.permute.xlu0 %555
      %v558 = vsub.f32 %v541, %v556
      %v559 = vmul.f32 %v558, 1.442695
      %v560 = vpow.pop %v559
      %s561 = scalar_lea.vmem [#allocation3], 8
      %v562 = vld [vmem:[%s561] sm:$0xff]
      %v563 = vmul.f32 %v552, %v562
      %v564 = vsel %vm359, %v560, 0.0
      %565 = vadd.xlane.f32.xlu0 %v564
      %v566 = vpop.xlane.xlu0 %565
      %v567 = vadd.f32 %v563, %v566
      %568 = vst.msk [vmem:[%s561] sm:$0xff] %vm381, %v567
      %s569 = scalar_lea.vmem [#allocation4], 8
      %v570 = vld [vmem:[%s569] sm:$0xff]
      %572 = vset.pattern.permute.xlu0 0
      %573 = vperm.xlu0 %572, %v552
      %v574 = vpop.permute.xlu0 %573
      %v576 = vmul.f32 %v574, %v570
      %578 = vrot.lane.b32.xlu0 %v280, 112
      %v579 = vpop.permute.xlu0 %578
      %v582 = vsel %vm359, %v560, 0
      %584 = vmatprep.subr.mxu0 0.0
      %585 = vmatpush1.msra.mxu0 %v579
      %586 = vmatprep.subr.mxu0 0.0
      %587 = vmatpush1.msra.mxu0 0.0
      %588 = vmatprep.subr.mxu0 0.0
      %589 = vmatpush1.msra.mxu0 0.0
      %590 = vmatprep.subr.mxu0 0.0
      %591 = vmatpush1.msra.mxu0 0.0
      %592 = vmatprep.subr.mxu0 0.0
      %593 = vmatpush1.msra.mxu0 0.0
      %594 = vmatprep.subr.mxu0 0.0
      %595 = vmatpush1.msra.mxu0 0.0
      %596 = vmatprep.subr.mxu0 0.0
      %597 = vmatpush1.msra.mxu0 0.0
      %598 = vmatprep.subr.mxu0 0.0
      %599 = vmatpush1.msra.mxu0 0.0
      %600 = vmatprep.subr.mxu0 0.0
      %601 = vmatpush1.msra.mxu0 0.0
      %602 = vmatprep.subr.mxu0 0.0
      %603 = vmatpush1.msra.mxu0 0.0
      %604 = vmatprep.subr.mxu0 0.0
      %605 = vmatpush1.msra.mxu0 0.0
      %606 = vmatprep.subr.mxu0 0.0
      %607 = vmatpush1.msra.mxu0 0.0
      %608 = vmatprep.subr.mxu0 0.0
      %609 = vmatpush1.msra.mxu0 0.0
      %610 = vmatprep.subr.mxu0 0.0
      %611 = vmatpush1.msra.mxu0 0.0
      %612 = vmatprep.subr.mxu0 0.0
      %613 = vmatpush1.msra.mxu0 0.0
      %614 = vmatprep.subr.mxu0 0.0
      %615 = vmatpush1.msra.mxu0 0.0
      %616 = vmatprep.subr.mxu0 0.0
      %617 = vmatpush1.msra.mxu0 0.0
      %618 = vmatprep.subr.mxu0 0.0
      %619 = vmatpush1.msra.mxu0 0.0
      %620 = vmatprep.subr.mxu0 0.0
      %621 = vmatpush1.msra.mxu0 0.0
      %622 = vmatprep.subr.mxu0 0.0
      %623 = vmatpush1.msra.mxu0 0.0
      %624 = vmatprep.subr.mxu0 0.0
      %625 = vmatpush1.msra.mxu0 0.0
      %626 = vmatprep.subr.mxu0 0.0
      %627 = vmatpush1.msra.mxu0 0.0
      %628 = vmatprep.subr.mxu0 0.0
      %629 = vmatpush1.msra.mxu0 0.0
      %630 = vmatprep.subr.mxu0 0.0
      %631 = vmatpush1.msra.mxu0 0.0
      %632 = vmatprep.subr.mxu0 0.0
      %633 = vmatpush1.msra.mxu0 0.0
      %634 = vmatprep.subr.mxu0 0.0
      %635 = vmatpush1.msra.mxu0 0.0
      %636 = vmatprep.subr.mxu0 0.0
      %637 = vmatpush1.msra.mxu0 0.0
      %638 = vmatprep.subr.mxu0 0.0
      %639 = vmatpush1.msra.mxu0 0.0
      %640 = vmatprep.subr.mxu0 0.0
      %641 = vmatpush1.msra.mxu0 0.0
      %642 = vmatprep.subr.mxu0 0.0
      %643 = vmatpush1.msra.mxu0 0.0
      %644 = vmatprep.subr.mxu0 0.0
      %645 = vmatpush1.msra.mxu0 0.0
      %646 = vmatprep.subr.mxu0 0.0
      %647 = vmatpush1.msra.mxu0 0.0
      %648 = vmatprep.mubr.f32.mxu0 0.0
      %649 = vmatmul.mubr.f32.gmra.mrb[0].mxu0 %v582
      %v650 = vpop.f32.mrb[0].mxu0
      %v651 = vadd.f32 0.0, %v650
      %v652 = vpop.f32.mrb[0].mxu0
      %653 = vdwg.mxu0
      %v654 = vadd.f32 %v576, %v651
      %655 = vst.msk [vmem:[%s569] sm:$0xff] %vm281, %v654
      %656 = vst.msk [vmem:[%s544] sm:$0xff] %vm381, %v549
      %657 = vrot.lane.b32.xlu0 %v278, 96
      %v658 = vpop.permute.xlu0 %657
      %659 = vrot.lane.b32.xlu0 %v279, 96
      %v660 = vpop.permute.xlu0 %659
      %v661 = vsel %vm281, %v658, 0
      %v663 = vsel %vm281, %v660, 0
      %665 = vmatprep.subr.mxu0 0.0
      %666 = vmatpush1.xpose.msra.mxu0 %v663
      %667 = vmatprep.subr.mxu0 0.0
      %668 = vmatpush1.xpose.msra.mxu0 0.0
      %669 = vmatprep.subr.mxu0 0.0
      %670 = vmatpush1.xpose.msra.mxu0 0.0
      %671 = vmatprep.subr.mxu0 0.0
      %672 = vmatpush1.xpose.msra.mxu0 0.0
      %673 = vmatprep.subr.mxu0 0.0
      %674 = vmatpush1.xpose.msra.mxu0 0.0
      %675 = vmatprep.subr.mxu0 0.0
      %676 = vmatpush1.xpose.msra.mxu0 0.0
      %677 = vmatprep.subr.mxu0 0.0
      %678 = vmatpush1.xpose.msra.mxu0 0.0
      %679 = vmatprep.subr.mxu0 0.0
      %680 = vmatpush1.xpose.msra.mxu0 0.0
      %681 = vmatprep.subr.mxu0 0.0
      %682 = vmatpush1.xpose.msra.mxu0 0.0
      %683 = vmatprep.subr.mxu0 0.0
      %684 = vmatpush1.xpose.msra.mxu0 0.0
      %685 = vmatprep.subr.mxu0 0.0
      %686 = vmatpush1.xpose.msra.mxu0 0.0
      %687 = vmatprep.subr.mxu0 0.0
      %688 = vmatpush1.xpose.msra.mxu0 0.0
      %689 = vmatprep.subr.mxu0 0.0
      %690 = vmatpush1.xpose.msra.mxu0 0.0
      %691 = vmatprep.subr.mxu0 0.0
      %692 = vmatpush1.xpose.msra.mxu0 0.0
      %693 = vmatprep.subr.mxu0 0.0
      %694 = vmatpush1.xpose.msra.mxu0 0.0
      %695 = vmatprep.subr.mxu0 0.0
      %696 = vmatpush1.xpose.msra.mxu0 0.0
      %697 = vmatprep.subr.mxu0 0.0
      %698 = vmatpush1.xpose.msra.mxu0 0.0
      %699 = vmatprep.subr.mxu0 0.0
      %700 = vmatpush1.xpose.msra.mxu0 0.0
      %701 = vmatprep.subr.mxu0 0.0
      %702 = vmatpush1.xpose.msra.mxu0 0.0
      %703 = vmatprep.subr.mxu0 0.0
      %704 = vmatpush1.xpose.msra.mxu0 0.0
      %705 = vmatprep.subr.mxu0 0.0
      %706 = vmatpush1.xpose.msra.mxu0 0.0
      %707 = vmatprep.subr.mxu0 0.0
      %708 = vmatpush1.xpose.msra.mxu0 0.0
      %709 = vmatprep.subr.mxu0 0.0
      %710 = vmatpush1.xpose.msra.mxu0 0.0
      %711 = vmatprep.subr.mxu0 0.0
      %712 = vmatpush1.xpose.msra.mxu0 0.0
      %713 = vmatprep.subr.mxu0 0.0
      %714 = vmatpush1.xpose.msra.mxu0 0.0
      %715 = vmatprep.subr.mxu0 0.0
      %716 = vmatpush1.xpose.msra.mxu0 0.0
      %717 = vmatprep.subr.mxu0 0.0
      %718 = vmatpush1.xpose.msra.mxu0 0.0
      %719 = vmatprep.subr.mxu0 0.0
      %720 = vmatpush1.xpose.msra.mxu0 0.0
      %721 = vmatprep.subr.mxu0 0.0
      %722 = vmatpush1.xpose.msra.mxu0 0.0
      %723 = vmatprep.subr.mxu0 0.0
      %724 = vmatpush1.xpose.msra.mxu0 0.0
      %725 = vmatprep.subr.mxu0 0.0
      %726 = vmatpush1.xpose.msra.mxu0 0.0
      %727 = vmatprep.subr.mxu0 0.0
      %728 = vmatpush1.xpose.msra.mxu0 0.0
      %729 = vmatprep.mubr.f32.mxu0 0.0
      %730 = vmatmul.mubr.f32.gmra.mrb[0].mxu0 %v661
      %v731 = vpop.f32.mrb[0].mxu0
      %v732 = vadd.f32 0.0, %v731
      %v733 = vpop.f32.mrb[0].mxu0
      %734 = vdwg.mxu0
      %s735 = scalar_lea.vmem [#allocation2], 16
      %v736 = vld [vmem:[%s735] sm:$0xff]
      %v737 = vsel %vm359, %v732, -inf
      %738 = vmax.xlane.f32.xlu0 %v737
      %v739 = vpop.xlane.xlu0 %738
      %v740 = vmax.f32 %v736, %v739
      %v741 = vsub.f32 %v736, %v740
      %v742 = vmul.f32 %v741, 1.442695
      %v743 = vpow.pop %v742
      %745 = vset.pattern.permute.xlu0 0
      %746 = vperm.xlu0 %745, %v740
      %v747 = vpop.permute.xlu0 %746
      %v749 = vsub.f32 %v732, %v747
      %v750 = vmul.f32 %v749, 1.442695
      %v751 = vpow.pop %v750
      %s752 = scalar_lea.vmem [#allocation3], 16
      %v753 = vld [vmem:[%s752] sm:$0xff]
      %v754 = vmul.f32 %v743, %v753
      %v755 = vsel %vm359, %v751, 0.0
      %756 = vadd.xlane.f32.xlu0 %v755
      %v757 = vpop.xlane.xlu0 %756
      %v758 = vadd.f32 %v754, %v757
      %759 = vst.msk [vmem:[%s752] sm:$0xff] %vm381, %v758
      %s760 = scalar_lea.vmem [#allocation4], 16
      %v761 = vld [vmem:[%s760] sm:$0xff]
      %763 = vset.pattern.permute.xlu0 0
      %764 = vperm.xlu0 %763, %v743
      %v765 = vpop.permute.xlu0 %764
      %v767 = vmul.f32 %v765, %v761
      %768 = vrot.lane.b32.xlu0 %v280, 96
      %v769 = vpop.permute.xlu0 %768
      %v772 = vsel %vm359, %v751, 0
      %774 = vmatprep.subr.mxu0 0.0
      %775 = vmatpush1.msra.mxu0 %v769
      %776 = vmatprep.subr.mxu0 0.0
      %777 = vmatpush1.msra.mxu0 0.0
      %778 = vmatprep.subr.mxu0 0.0
      %779 = vmatpush1.msra.mxu0 0.0
      %780 = vmatprep.subr.mxu0 0.0
      %781 = vmatpush1.msra.mxu0 0.0
      %782 = vmatprep.subr.mxu0 0.0
      %783 = vmatpush1.msra.mxu0 0.0
      %784 = vmatprep.subr.mxu0 0.0
      %785 = vmatpush1.msra.mxu0 0.0
      %786 = vmatprep.subr.mxu0 0.0
      %787 = vmatpush1.msra.mxu0 0.0
      %788 = vmatprep.subr.mxu0 0.0
      %789 = vmatpush1.msra.mxu0 0.0
      %790 = vmatprep.subr.mxu0 0.0
      %791 = vmatpush1.msra.mxu0 0.0
      %792 = vmatprep.subr.mxu0 0.0
      %793 = vmatpush1.msra.mxu0 0.0
      %794 = vmatprep.subr.mxu0 0.0
      %795 = vmatpush1.msra.mxu0 0.0
      %796 = vmatprep.subr.mxu0 0.0
      %797 = vmatpush1.msra.mxu0 0.0
      %798 = vmatprep.subr.mxu0 0.0
      %799 = vmatpush1.msra.mxu0 0.0
      %800 = vmatprep.subr.mxu0 0.0
      %801 = vmatpush1.msra.mxu0 0.0
      %802 = vmatprep.subr.mxu0 0.0
      %803 = vmatpush1.msra.mxu0 0.0
      %804 = vmatprep.subr.mxu0 0.0
      %805 = vmatpush1.msra.mxu0 0.0
      %806 = vmatprep.subr.mxu0 0.0
      %807 = vmatpush1.msra.mxu0 0.0
      %808 = vmatprep.subr.mxu0 0.0
      %809 = vmatpush1.msra.mxu0 0.0
      %810 = vmatprep.subr.mxu0 0.0
      %811 = vmatpush1.msra.mxu0 0.0
      %812 = vmatprep.subr.mxu0 0.0
      %813 = vmatpush1.msra.mxu0 0.0
      %814 = vmatprep.subr.mxu0 0.0
      %815 = vmatpush1.msra.mxu0 0.0
      %816 = vmatprep.subr.mxu0 0.0
      %817 = vmatpush1.msra.mxu0 0.0
      %818 = vmatprep.subr.mxu0 0.0
      %819 = vmatpush1.msra.mxu0 0.0
      %820 = vmatprep.subr.mxu0 0.0
      %821 = vmatpush1.msra.mxu0 0.0
      %822 = vmatprep.subr.mxu0 0.0
      %823 = vmatpush1.msra.mxu0 0.0
      %824 = vmatprep.subr.mxu0 0.0
      %825 = vmatpush1.msra.mxu0 0.0
      %826 = vmatprep.subr.mxu0 0.0
      %827 = vmatpush1.msra.mxu0 0.0
      %828 = vmatprep.subr.mxu0 0.0
      %829 = vmatpush1.msra.mxu0 0.0
      %830 = vmatprep.subr.mxu0 0.0
      %831 = vmatpush1.msra.mxu0 0.0
      %832 = vmatprep.subr.mxu0 0.0
      %833 = vmatpush1.msra.mxu0 0.0
      %834 = vmatprep.subr.mxu0 0.0
      %835 = vmatpush1.msra.mxu0 0.0
      %836 = vmatprep.subr.mxu0 0.0
      %837 = vmatpush1.msra.mxu0 0.0
      %838 = vmatprep.mubr.f32.mxu0 0.0
      %839 = vmatmul.mubr.f32.gmra.mrb[0].mxu0 %v772
      %v840 = vpop.f32.mrb[0].mxu0
      %v841 = vadd.f32 0.0, %v840
      %v842 = vpop.f32.mrb[0].mxu0
      %843 = vdwg.mxu0
      %v844 = vadd.f32 %v767, %v841
      %845 = vst.msk [vmem:[%s760] sm:$0xff] %vm281, %v844
      %846 = vst.msk [vmem:[%s735] sm:$0xff] %vm381, %v740
      %847 = vrot.lane.b32.xlu0 %v278, 80
      %v848 = vpop.permute.xlu0 %847
      %849 = vrot.lane.b32.xlu0 %v279, 80
      %v850 = vpop.permute.xlu0 %849
      %v851 = vsel %vm281, %v848, 0
      %v853 = vsel %vm281, %v850, 0
      %855 = vmatprep.subr.mxu0 0.0
      %856 = vmatpush1.xpose.msra.mxu0 %v853
      %857 = vmatprep.subr.mxu0 0.0
      %858 = vmatpush1.xpose.msra.mxu0 0.0
      %859 = vmatprep.subr.mxu0 0.0
      %860 = vmatpush1.xpose.msra.mxu0 0.0
      %861 = vmatprep.subr.mxu0 0.0
      %862 = vmatpush1.xpose.msra.mxu0 0.0
      %863 = vmatprep.subr.mxu0 0.0
      %864 = vmatpush1.xpose.msra.mxu0 0.0
      %865 = vmatprep.subr.mxu0 0.0
      %866 = vmatpush1.xpose.msra.mxu0 0.0
      %867 = vmatprep.subr.mxu0 0.0
      %868 = vmatpush1.xpose.msra.mxu0 0.0
      %869 = vmatprep.subr.mxu0 0.0
      %870 = vmatpush1.xpose.msra.mxu0 0.0
      %871 = vmatprep.subr.mxu0 0.0
      %872 = vmatpush1.xpose.msra.mxu0 0.0
      %873 = vmatprep.subr.mxu0 0.0
      %874 = vmatpush1.xpose.msra.mxu0 0.0
      %875 = vmatprep.subr.mxu0 0.0
      %876 = vmatpush1.xpose.msra.mxu0 0.0
      %877 = vmatprep.subr.mxu0 0.0
      %878 = vmatpush1.xpose.msra.mxu0 0.0
      %879 = vmatprep.subr.mxu0 0.0
      %880 = vmatpush1.xpose.msra.mxu0 0.0
      %881 = vmatprep.subr.mxu0 0.0
      %882 = vmatpush1.xpose.msra.mxu0 0.0
      %883 = vmatprep.subr.mxu0 0.0
      %884 = vmatpush1.xpose.msra.mxu0 0.0
      %885 = vmatprep.subr.mxu0 0.0
      %886 = vmatpush1.xpose.msra.mxu0 0.0
      %887 = vmatprep.subr.mxu0 0.0
      %888 = vmatpush1.xpose.msra.mxu0 0.0
      %889 = vmatprep.subr.mxu0 0.0
      %890 = vmatpush1.xpose.msra.mxu0 0.0
      %891 = vmatprep.subr.mxu0 0.0
      %892 = vmatpush1.xpose.msra.mxu0 0.0
      %893 = vmatprep.subr.mxu0 0.0
      %894 = vmatpush1.xpose.msra.mxu0 0.0
      %895 = vmatprep.subr.mxu0 0.0
      %896 = vmatpush1.xpose.msra.mxu0 0.0
      %897 = vmatprep.subr.mxu0 0.0
      %898 = vmatpush1.xpose.msra.mxu0 0.0
      %899 = vmatprep.subr.mxu0 0.0
      %900 = vmatpush1.xpose.msra.mxu0 0.0
      %901 = vmatprep.subr.mxu0 0.0
      %902 = vmatpush1.xpose.msra.mxu0 0.0
      %903 = vmatprep.subr.mxu0 0.0
      %904 = vmatpush1.xpose.msra.mxu0 0.0
      %905 = vmatprep.subr.mxu0 0.0
      %906 = vmatpush1.xpose.msra.mxu0 0.0
      %907 = vmatprep.subr.mxu0 0.0
      %908 = vmatpush1.xpose.msra.mxu0 0.0
      %909 = vmatprep.subr.mxu0 0.0
      %910 = vmatpush1.xpose.msra.mxu0 0.0
      %911 = vmatprep.subr.mxu0 0.0
      %912 = vmatpush1.xpose.msra.mxu0 0.0
      %913 = vmatprep.subr.mxu0 0.0
      %914 = vmatpush1.xpose.msra.mxu0 0.0
      %915 = vmatprep.subr.mxu0 0.0
      %916 = vmatpush1.xpose.msra.mxu0 0.0
      %917 = vmatprep.subr.mxu0 0.0
      %918 = vmatpush1.xpose.msra.mxu0 0.0
      %919 = vmatprep.mubr.f32.mxu0 0.0
      %920 = vmatmul.mubr.f32.gmra.mrb[0].mxu0 %v851
      %v921 = vpop.f32.mrb[0].mxu0
      %v922 = vadd.f32 0.0, %v921
      %v923 = vpop.f32.mrb[0].mxu0
      %924 = vdwg.mxu0
      %s925 = scalar_lea.vmem [#allocation2], 24
      %v926 = vld [vmem:[%s925] sm:$0xff]
      %v927 = vsel %vm359, %v922, -inf
      %928 = vmax.xlane.f32.xlu0 %v927
      %v929 = vpop.xlane.xlu0 %928
      %v930 = vmax.f32 %v926, %v929
      %v931 = vsub.f32 %v926, %v930
      %v932 = vmul.f32 %v931, 1.442695
      %v933 = vpow.pop %v932
      %935 = vset.pattern.permute.xlu0 0
      %936 = vperm.xlu0 %935, %v930
      %v937 = vpop.permute.xlu0 %936
      %v939 = vsub.f32 %v922, %v937
      %v940 = vmul.f32 %v939, 1.442695
      %v941 = vpow.pop %v940
      %s942 = scalar_lea.vmem [#allocation3], 24
      %v943 = vld [vmem:[%s942] sm:$0xff]
      %v944 = vmul.f32 %v933, %v943
      %v945 = vsel %vm359, %v941, 0.0
      %946 = vadd.xlane.f32.xlu0 %v945
      %v947 = vpop.xlane.xlu0 %946
      %v948 = vadd.f32 %v944, %v947
      %949 = vst.msk [vmem:[%s942] sm:$0xff] %vm381, %v948
      %s950 = scalar_lea.vmem [#allocation4], 24
      %v951 = vld [vmem:[%s950] sm:$0xff]
      %953 = vset.pattern.permute.xlu0 0
      %954 = vperm.xlu0 %953, %v933
      %v955 = vpop.permute.xlu0 %954
      %v957 = vmul.f32 %v955, %v951
      %958 = vrot.lane.b32.xlu0 %v280, 80
      %v959 = vpop.permute.xlu0 %958
      %v962 = vsel %vm359, %v941, 0
      %964 = vmatprep.subr.mxu0 0.0
      %965 = vmatpush1.msra.mxu0 %v959
      %966 = vmatprep.subr.mxu0 0.0
      %967 = vmatpush1.msra.mxu0 0.0
      %968 = vmatprep.subr.mxu0 0.0
      %969 = vmatpush1.msra.mxu0 0.0
      %970 = vmatprep.subr.mxu0 0.0
      %971 = vmatpush1.msra.mxu0 0.0
      %972 = vmatprep.subr.mxu0 0.0
      %973 = vmatpush1.msra.mxu0 0.0
      %974 = vmatprep.subr.mxu0 0.0
      %975 = vmatpush1.msra.mxu0 0.0
      %976 = vmatprep.subr.mxu0 0.0
      %977 = vmatpush1.msra.mxu0 0.0
      %978 = vmatprep.subr.mxu0 0.0
      %979 = vmatpush1.msra.mxu0 0.0
      %980 = vmatprep.subr.mxu0 0.0
      %981 = vmatpush1.msra.mxu0 0.0
      %982 = vmatprep.subr.mxu0 0.0
      %983 = vmatpush1.msra.mxu0 0.0
      %984 = vmatprep.subr.mxu0 0.0
      %985 = vmatpush1.msra.mxu0 0.0
      %986 = vmatprep.subr.mxu0 0.0
      %987 = vmatpush1.msra.mxu0 0.0
      %988 = vmatprep.subr.mxu0 0.0
      %989 = vmatpush1.msra.mxu0 0.0
      %990 = vmatprep.subr.mxu0 0.0
      %991 = vmatpush1.msra.mxu0 0.0
      %992 = vmatprep.subr.mxu0 0.0
      %993 = vmatpush1.msra.mxu0 0.0
      %994 = vmatprep.subr.mxu0 0.0
      %995 = vmatpush1.msra.mxu0 0.0
      %996 = vmatprep.subr.mxu0 0.0
      %997 = vmatpush1.msra.mxu0 0.0
      %998 = vmatprep.subr.mxu0 0.0
      %999 = vmatpush1.msra.mxu0 0.0
      %1000 = vmatprep.subr.mxu0 0.0
      %1001 = vmatpush1.msra.mxu0 0.0
      %1002 = vmatprep.subr.mxu0 0.0
      %1003 = vmatpush1.msra.mxu0 0.0
      %1004 = vmatprep.subr.mxu0 0.0
      %1005 = vmatpush1.msra.mxu0 0.0
      %1006 = vmatprep.subr.mxu0 0.0
      %1007 = vmatpush1.msra.mxu0 0.0
      %1008 = vmatprep.subr.mxu0 0.0
      %1009 = vmatpush1.msra.mxu0 0.0
      %1010 = vmatprep.subr.mxu0 0.0
      %1011 = vmatpush1.msra.mxu0 0.0
      %1012 = vmatprep.subr.mxu0 0.0
      %1013 = vmatpush1.msra.mxu0 0.0
      %1014 = vmatprep.subr.mxu0 0.0
      %1015 = vmatpush1.msra.mxu0 0.0
      %1016 = vmatprep.subr.mxu0 0.0
      %1017 = vmatpush1.msra.mxu0 0.0
      %1018 = vmatprep.subr.mxu0 0.0
      %1019 = vmatpush1.msra.mxu0 0.0
      %1020 = vmatprep.subr.mxu0 0.0
      %1021 = vmatpush1.msra.mxu0 0.0
      %1022 = vmatprep.subr.mxu0 0.0
      %1023 = vmatpush1.msra.mxu0 0.0
      %1024 = vmatprep.subr.mxu0 0.0
      %1025 = vmatpush1.msra.mxu0 0.0
      %1026 = vmatprep.subr.mxu0 0.0
      %1027 = vmatpush1.msra.mxu0 0.0
      %1028 = vmatprep.mubr.f32.mxu0 0.0
      %1029 = vmatmul.mubr.f32.gmra.mrb[0].mxu0 %v962
      %v1030 = vpop.f32.mrb[0].mxu0
      %v1031 = vadd.f32 0.0, %v1030
      %v1032 = vpop.f32.mrb[0].mxu0
      %1033 = vdwg.mxu0
      %v1034 = vadd.f32 %v957, %v1031
      %1035 = vst.msk [vmem:[%s950] sm:$0xff] %vm281, %v1034
      %1036 = vst.msk [vmem:[%s925] sm:$0xff] %vm381, %v930
      // Predicated region
      $region37: #{attention_forward.4} parent=31 // pred_check
        %p1037 = pneg %p260
      $region38: #{attention_forward.4} parent=31 // pred_check_branch
        %1039 = sbr.rel (%p1037) target = $region40
      $region39: #{attention_forward.4} parent=31 // pred_region
        %v1040 = vld [vmem:[#allocation3] sm:$0xff]
        %v1041 = vrcp.pop %v1040
        %v1042 = vmul.f32 %v1040, %v1041
        %v1043 = vsub.f32 2.0, %v1042
        %v1044 = vmul.f32 %v1041, %v1043
        %v1045 = vld [vmem:[#allocation4] sm:$0xff]
        %1047 = vset.pattern.permute.xlu0 0
        %1048 = vperm.xlu0 %1047, %v1044
        %v1049 = vpop.permute.xlu0 %1048
        %v1051 = vmul.f32 %v1045, %v1049
        %v1052 = vld [vmem:[%s561] sm:$0xff]
        %v1053 = vrcp.pop %v1052
        %v1054 = vmul.f32 %v1052, %v1053
        %v1055 = vsub.f32 2.0, %v1054
        %v1056 = vmul.f32 %v1053, %v1055
        %v1057 = vld [vmem:[%s569] sm:$0xff]
        %1059 = vset.pattern.permute.xlu0 0
        %1060 = vperm.xlu0 %1059, %v1056
        %v1061 = vpop.permute.xlu0 %1060
        %v1063 = vmul.f32 %v1057, %v1061
        %v1064 = vld [vmem:[%s752] sm:$0xff]
        %v1065 = vrcp.pop %v1064
        %v1066 = vmul.f32 %v1064, %v1065
        %v1067 = vsub.f32 2.0, %v1066
        %v1068 = vmul.f32 %v1065, %v1067
        %v1069 = vld [vmem:[%s760] sm:$0xff]
        %1071 = vset.pattern.permute.xlu0 0
        %1072 = vperm.xlu0 %1071, %v1068
        %v1073 = vpop.permute.xlu0 %1072
        %v1075 = vmul.f32 %v1069, %v1073
        %v1076 = vld [vmem:[%s942] sm:$0xff]
        %v1077 = vrcp.pop %v1076
        %v1078 = vmul.f32 %v1076, %v1077
        %v1079 = vsub.f32 2.0, %v1078
        %v1080 = vmul.f32 %v1077, %v1079
        %v1081 = vld [vmem:[%s950] sm:$0xff]
        %1083 = vset.pattern.permute.xlu0 0
        %1084 = vperm.xlu0 %1083, %v1080
        %v1085 = vpop.permute.xlu0 %1084
        %v1087 = vmul.f32 %v1081, %v1085
        %1089 = vrot.lane.b32.xlu0 %v1063, 16
        %v1090 = vpop.permute.xlu0 %1089
        %1093 = vrot.lane.b32.xlu0 %v1075, 32
        %v1094 = vpop.permute.xlu0 %1093
        %1097 = vrot.lane.b32.xlu0 %v1087, 48
        %v1098 = vpop.permute.xlu0 %1097
        %v1100 = vsel %vm281, %v1051, %v1090
        %vm1101 = vcmask 261120
        %v1102 = vsel %vm1101, %v1100, %v1094
        %vm1103 = vcmask 392192
        %v1104 = vsel %vm1103, %v1102, %v1098
        %vm1105 = vcmask 523264
        %1106 = vst.msk [vmem:[%s259] sm:$0xff] %vm1105, %v1104
      $region40: #{attention_forward.4} parent=31 // pred_fallthru
        _
      %p1107 = scmp.lt.s32.totalorder %s19, 1
      %s1108 = scalar_select %p1107, %s19, 1
      %p1109 = scmp.lt.s32.totalorder %s20, 0
      %s1110 = scalar_select %p1109, %s20, 0
      %s1111 = sadd.s32 %s1110, %s1108
      %s1112 = smul.addr %s1111, 8
      %s1113 = scalar_lea.vmem %s3, %s1112
      // Predicated region
      $region41: #{attention_forward.4} parent=31 // pred_check
        %p1114 = pneg %p137
      $region42: #{attention_forward.4} parent=31 // pred_check_branch
        %1116 = sbr.rel (%p1114) target = $region44
      $region43: #{attention_forward.4} parent=31 // pred_region
        _
      $region44: #{attention_forward.4} parent=31 // pred_fallthru
        _
    $region32: #{attention_forward.4} parent=5 // pred_fallthru
      _
    %p1117 = scmp.le.s32.totalorder 2, %s9
    // Predicated region
    $region45: #{attention_forward.4} parent=5 // pred_check
      %p1118 = pneg %p1117
    $region46: #{attention_forward.4} parent=5 // pred_check_branch
      %1120 = sbr.rel (%p1118) target = $region48
    $region47: #{attention_forward.4} parent=5 // pred_region
      %s1121 = ssub.s32 %s9, 2
      // Predicated region
      $region49: #{attention_forward.4} parent=47 // pred_check
        %p1122 = pneg %p143
      $region50: #{attention_forward.4} parent=47 // pred_check_branch
        %1124 = sbr.rel (%p1122) target = $region52
      $region51: #{attention_forward.4} parent=47 // pred_region
        %p1125 = scmp.lt.s32.totalorder %s22, 1
        %s1126 = scalar_select %p1125, %s22, 1
        %p1127 = scmp.lt.s32.totalorder %s23, 0
        %s1128 = scalar_select %p1127, %s23, 0
        %s1129 = sadd.s32 %s1128, %s1126
        %s1130 = smul.addr %s1129, 8
        %s1131 = scalar_lea.vmem %s3, %s1130
      $region52: #{attention_forward.4} parent=47 // pred_fallthru
        _
    $region48: #{attention_forward.4} parent=5 // pred_fallthru
      _
  $region6: #{attention_forward.4} parent=0 // loop_footer
    %s13 = sadd.s32 1, %s9
  $region7: #{attention_forward.4} parent=0 // loop_footer_branch
    %8 = sbr.rel target = $region3
  $region8: #{attention_forward.4} parent=0 // loop_exit
    _

</llo_original>
